<compile_context>
chip_gen: v6e
topology: v6e:2x2x1
jax: 0.10.0
libtpu: 0.0.40
codegen_flags: <defaults>
</compile_context>

<pallas_src>
import math

import jax
import jax.numpy as jnp
from jax.experimental import pallas as pl
from jax.experimental.pallas import tpu as pltpu

# ---- model dims (small, consistent with the tutorial module; d_k * head == dim) ----
B = 2          # batch
S = 8          # sequence length
D_MODEL = 32   # "dim"
N_HEADS = 4    # "head"
D_K = 8        # "d_k" (also the value dim)
LN_EPS = 1e-5
NEG_INF = -1e9  # masked_fill_ value of the tutorial's ScaledDotProductAttention

HDK = N_HEADS * D_K            # 32, width of each of the Q/K/V projections
assert HDK == D_MODEL          # required by the residual Z + input
C_Q, C_K, C_V, C_Z = 0, HDK, 2 * HDK, 3 * HDK   # column offsets in the packed weight
W_COLS = 3 * HDK + D_MODEL     # 128 (lane-dense packed weight)
OUT_COLS = 128                 # lane-dense output slab: [out(32) | attn(32) | pad(64)]


def mha_kernel(x_ref, maskadd_ref, w_ref, b_ref, out_ref):
    x = x_ref[...]              # (B*S, D_MODEL)
    mask_add = maskadd_ref[...]  # (B*H*S, S), 0.0 or -1e9, batched-score layout
    w = w_ref[...]              # (D_MODEL, 128) = [Wq/sqrt(dk) | Wk | Wv | Wz]
    b = b_ref[...]              # (1, 128)       = [bq/sqrt(dk) | bk | bv | bz]

    # Fused Q/K/V projection: one MXU push over all 128 packed columns.
    # (Columns [C_Z, 128) of this result are junk -- x @ Wz -- and are never read.)
    qkvz = jnp.dot(x, w, preferred_element_type=jnp.float32) + b    # (B*S, 128)

    q = qkvz[:, C_Q:C_Q + HDK]   # (B*S, 32), already 1/sqrt(dk)-scaled
    k = qkvz[:, C_K:C_K + HDK]   # (B*S, 32)
    v = qkvz[:, C_V:C_V + HDK]   # (B*S, 32)

    # One transpose of K for all batches/heads (instead of 8 per-head kh.T).
    kT = k.T                     # (HDK, B*S) = (32, 16)

    # 8 tiny MXU score matmuls (MXU has huge slack); stack tiles sublane-wise.
    score_tiles = []
    for bb in range(B):                       # static unroll over batches
        r0 = bb * S
        for h in range(N_HEADS):              # static unroll over heads
            c0 = h * D_K
            qh = q[r0:r0 + S, c0:c0 + D_K]                 # (S, D_K)
            khT = kT[c0:c0 + D_K, r0:r0 + S]               # (D_K, S)
            score_tiles.append(
                jnp.dot(qh, khT, preferred_element_type=jnp.float32))  # (S, S)

    # Batched masking + softmax over all (batch, head) tiles at once: one add,
    # one max, one exp, one sum, one reciprocal, one mul.
    s = jnp.concatenate(score_tiles, axis=0) + mask_add             # (B*H*S, S)
    mx = jnp.max(s, axis=-1, keepdims=True)
    e = jnp.exp(s - mx)
    denom = jnp.sum(e, axis=-1, keepdims=True)
    # approx=False kept to guarantee the 1e-4 tolerance (single batched reciprocal).
    a = e * pl.reciprocal(denom, approx=False)                       # (B*H*S, S)

    # Per-(batch, head) context matmuls; assemble context and attention maps in
    # registers (no VMEM scratch round-trip).
    ctx_rows = []
    attn_rows = []
    for bb in range(B):
        r0 = bb * S
        ctx_cols = []
        attn_cols = []
        for h in range(N_HEADS):
            t0 = (bb * N_HEADS + h) * S
            a_bh = a[t0:t0 + S, :]                                    # (S, S)
            vh = v[r0:r0 + S, h * D_K:(h + 1) * D_K]                  # (S, D_K)
            ctx_cols.append(jnp.dot(a_bh, vh, preferred_element_type=jnp.float32))
            attn_cols.append(a_bh)
        ctx_rows.append(jnp.concatenate(ctx_cols, axis=1))            # (S, HDK)
        attn_rows.append(jnp.concatenate(attn_cols, axis=1))          # (S, H*S)
    ctx = jnp.concatenate(ctx_rows, axis=0)                           # (B*S, HDK)
    attn = jnp.concatenate(attn_rows, axis=0)                         # (B*S, H*S)

    # Output projection Wz, residual, LayerNorm (fresh nn.LayerNorm => gamma=1,
    # beta=0, eps=1e-5).
    z = jnp.dot(ctx, w[:, C_Z:], preferred_element_type=jnp.float32) + b[:, C_Z:]
    y = z + x
    mean = jnp.mean(y, axis=-1, keepdims=True)
    var = jnp.mean((y - mean) ** 2, axis=-1, keepdims=True)
    y_ln = (y - mean) * jax.lax.rsqrt(var + LN_EPS)                   # (B*S, D_MODEL)

    # Single lane-dense (B*S, 128) store: [out | attn | zero pad].
    pad = jnp.zeros((B * S, OUT_COLS - D_MODEL - N_HEADS * S), jnp.float32)
    out_ref[...] = jnp.concatenate([y_ln, attn, pad], axis=1)


@jax.jit
def multi_head_attention(x, atten_mask, w_packed, b_packed):
    """x: (B, S, D_MODEL) f32; atten_mask: (B, S, S) f32 (1.0 = masked position)."""
    BS = B * S
    x_flat = x.reshape(BS, D_MODEL)

    # Additive mask (0 / -1e9), pre-broadcast to the batched score layout
    # (B*H*S, S) used inside the kernel. Equivalent to masked_fill(-1e9): the
    # exp of any masked score underflows to exactly 0 either way.
    mask_add = jnp.where(atten_mask > 0.5, jnp.float32(NEG_INF), jnp.float32(0.0))
    mask_add = jnp.broadcast_to(
        mask_add[:, None, :, :], (B, N_HEADS, S, S)).reshape(B * N_HEADS * S, S)

    combined = pl.pallas_call(
        mha_kernel,
        out_shape=jax.ShapeDtypeStruct((BS, OUT_COLS), jnp.float32),
        in_specs=[pl.BlockSpec(memory_space=pltpu.MemorySpace.VMEM)] * 4,
        out_specs=pl.BlockSpec(memory_space=pltpu.MemorySpace.VMEM),
    )(x_flat, mask_add, w_packed, b_packed)

    out = combined[:, :D_MODEL].reshape(B, S, D_MODEL)
    attn = combined[:, D_MODEL:D_MODEL + N_HEADS * S].reshape(
        B, S, N_HEADS, S).transpose(0, 2, 1, 3)
    return out, attn


def make_params(key):
    ks = jax.random.split(key, 8)
    scale = 0.1
    return {
        "wq": scale * jax.random.normal(ks[0], (D_MODEL, HDK), jnp.float32),
        "bq": scale * jax.random.normal(ks[1], (1, HDK), jnp.float32),
        "wk": scale * jax.random.normal(ks[2], (D_MODEL, HDK), jnp.float32),
        "bk": scale * jax.random.normal(ks[3], (1, HDK), jnp.float32),
        "wv": scale * jax.random.normal(ks[4], (D_MODEL, HDK), jnp.float32),
        "bv": scale * jax.random.normal(ks[5], (1, HDK), jnp.float32),
        "wz": scale * jax.random.normal(ks[6], (HDK, D_MODEL), jnp.float32),
        "bz": scale * jax.random.normal(ks[7], (1, D_MODEL), jnp.float32),
    }


def pack_params(p):
    """One-time param transform: fold 1/sqrt(d_k) into Wq/bq and pack everything into
    one lane-dense (D_MODEL, 128) weight and one (1, 128) bias."""
    inv_sqrt_dk = jnp.float32(1.0 / math.sqrt(D_K))
    w_packed = jnp.concatenate(
        [p["wq"] * inv_sqrt_dk, p["wk"], p["wv"], p["wz"]], axis=1)   # (32, 128)
    b_packed = jnp.concatenate(
        [p["bq"] * inv_sqrt_dk, p["bk"], p["bv"], p["bz"]], axis=1)   # (1, 128)
    return w_packed, b_packed


def reference(x, mask, p):
    """Pure-JAX mirror of the PyTorch MultiHeadAttention forward."""
    q = x @ p["wq"] + p["bq"][0]
    k = x @ p["wk"] + p["bk"][0]
    v = x @ p["wv"] + p["bv"][0]
    q = q.reshape(B, S, N_HEADS, D_K).transpose(0, 2, 1, 3)
    k = k.reshape(B, S, N_HEADS, D_K).transpose(0, 2, 1, 3)
    v = v.reshape(B, S, N_HEADS, D_K).transpose(0, 2, 1, 3)
    scores = jnp.einsum("bhqd,bhkd->bhqk", q, k) / math.sqrt(D_K)
    scores = jnp.where(mask[:, None, :, :] > 0.5, NEG_INF, scores)
    attn = jax.nn.softmax(scores, axis=-1)
    ctx = jnp.einsum("bhqk,bhkd->bhqd", attn, v)
    ctx = ctx.transpose(0, 2, 1, 3).reshape(B, S, N_HEADS * D_K)
    z = ctx @ p["wz"] + p["bz"][0]
    y = z + x
    m = jnp.mean(y, axis=-1, keepdims=True)
    var = jnp.mean((y - m) ** 2, axis=-1, keepdims=True)
    out = (y - m) / jnp.sqrt(var + LN_EPS)   # LayerNorm with gamma=1, beta=0
    return out, attn


if __name__ == "__main__":
    key = jax.random.PRNGKey(0)
    k_x, k_p = jax.random.split(key)

    x = jax.random.normal(k_x, (B, S, D_MODEL), jnp.float32)

    # pad mask: batch 0 has no padding; batch 1's last two key positions are pad.
    key_is_pad = jnp.zeros((B, S), jnp.float32).at[1, -2:].set(1.0)
    atten_mask = jnp.broadcast_to(key_is_pad[:, None, :], (B, S, S)).astype(jnp.float32)

    params = make_params(k_p)
    w_packed, b_packed = pack_params(params)

    out, attn = multi_head_attention(x, atten_mask, w_packed, b_packed)
    out = jax.block_until_ready(out)
    attn = jax.block_until_ready(attn)

    ref_out, ref_attn = reference(x, atten_mask, params)
    assert jnp.allclose(out, ref_out, atol=1e-4), "output mismatch"
    assert jnp.allclose(attn, ref_attn, atol=1e-4), "attention mismatch"

    print("KERNEL_OK")
</pallas_src>

<mosaic_0001>
module attributes {stable_mosaic.version = 11 : i64} {
  func.func @mha_kernel(%arg0: memref<16x32xf32, #tpu.memory_space<vmem>>, %arg1: memref<64x8xf32, #tpu.memory_space<vmem>>, %arg2: memref<32x128xf32, #tpu.memory_space<vmem>>, %arg3: memref<1x128xf32, #tpu.memory_space<vmem>>, %arg4: memref<16x128xf32, #tpu.memory_space<vmem>>) attributes {dimension_semantics = [], scalar_prefetch = 0 : i64, scratch_operands = 0 : i64, tpu.core_type = #tpu.core_type<tc>} {
    %c0 = arith.constant 0 : index
    %c0_0 = arith.constant 0 : index
    %0 = vector.load %arg0[%c0, %c0_0] : memref<16x32xf32, #tpu.memory_space<vmem>>, vector<16x32xf32>
    %c0_1 = arith.constant 0 : index
    %c0_2 = arith.constant 0 : index
    %1 = vector.load %arg1[%c0_1, %c0_2] : memref<64x8xf32, #tpu.memory_space<vmem>>, vector<64x8xf32>
    %c0_3 = arith.constant 0 : index
    %c0_4 = arith.constant 0 : index
    %2 = vector.load %arg2[%c0_3, %c0_4] : memref<32x128xf32, #tpu.memory_space<vmem>>, vector<32x128xf32>
    %c0_5 = arith.constant 0 : index
    %c0_6 = arith.constant 0 : index
    %3 = vector.load %arg3[%c0_5, %c0_6] : memref<1x128xf32, #tpu.memory_space<vmem>>, vector<1x128xf32>
    %cst = arith.constant dense<0.000000e+00> : vector<16x128xf32>
    %4 = tpu.matmul %0, %2, %cst {dimension_numbers = #tpu.dot_dimension_numbers<[1], [0], [0], [1], [0, 0, 1, 1], [], []>} : vector<16x32xf32>, vector<32x128xf32>, vector<16x128xf32> -> vector<16x128xf32>
    %5 = vector.broadcast %3 : vector<1x128xf32> to vector<16x128xf32>
    %6 = arith.addf %4, %5 : vector<16x128xf32>
    %7 = vector.extract_strided_slice %6 {offsets = [0, 0], sizes = [16, 32], strides = [1, 1]} : vector<16x128xf32> to vector<16x32xf32>
    %8 = vector.extract_strided_slice %6 {offsets = [0, 32], sizes = [16, 32], strides = [1, 1]} : vector<16x128xf32> to vector<16x32xf32>
    %9 = vector.extract_strided_slice %6 {offsets = [0, 64], sizes = [16, 32], strides = [1, 1]} : vector<16x128xf32> to vector<16x32xf32>
    %10 = tpu.transpose %8, [1, 0] : vector<16x32xf32> -> vector<32x16xf32>
    %11 = vector.extract_strided_slice %7 {offsets = [0, 0], sizes = [8, 8], strides = [1, 1]} : vector<16x32xf32> to vector<8x8xf32>
    %12 = vector.extract_strided_slice %10 {offsets = [0, 0], sizes = [8, 8], strides = [1, 1]} : vector<32x16xf32> to vector<8x8xf32>
    %cst_7 = arith.constant dense<0.000000e+00> : vector<8x8xf32>
    %13 = tpu.matmul %11, %12, %cst_7 {dimension_numbers = #tpu.dot_dimension_numbers<[1], [0], [0], [1], [0, 0, 1, 1], [], []>} : vector<8x8xf32>, vector<8x8xf32>, vector<8x8xf32> -> vector<8x8xf32>
    %14 = vector.extract_strided_slice %7 {offsets = [0, 8], sizes = [8, 8], strides = [1, 1]} : vector<16x32xf32> to vector<8x8xf32>
    %15 = vector.extract_strided_slice %10 {offsets = [8, 0], sizes = [8, 8], strides = [1, 1]} : vector<32x16xf32> to vector<8x8xf32>
    %cst_8 = arith.constant dense<0.000000e+00> : vector<8x8xf32>
    %16 = tpu.matmul %14, %15, %cst_8 {dimension_numbers = #tpu.dot_dimension_numbers<[1], [0], [0], [1], [0, 0, 1, 1], [], []>} : vector<8x8xf32>, vector<8x8xf32>, vector<8x8xf32> -> vector<8x8xf32>
    %17 = vector.extract_strided_slice %7 {offsets = [0, 16], sizes = [8, 8], strides = [1, 1]} : vector<16x32xf32> to vector<8x8xf32>
    %18 = vector.extract_strided_slice %10 {offsets = [16, 0], sizes = [8, 8], strides = [1, 1]} : vector<32x16xf32> to vector<8x8xf32>
    %cst_9 = arith.constant dense<0.000000e+00> : vector<8x8xf32>
    %19 = tpu.matmul %17, %18, %cst_9 {dimension_numbers = #tpu.dot_dimension_numbers<[1], [0], [0], [1], [0, 0, 1, 1], [], []>} : vector<8x8xf32>, vector<8x8xf32>, vector<8x8xf32> -> vector<8x8xf32>
    %20 = vector.extract_strided_slice %7 {offsets = [0, 24], sizes = [8, 8], strides = [1, 1]} : vector<16x32xf32> to vector<8x8xf32>
    %21 = vector.extract_strided_slice %10 {offsets = [24, 0], sizes = [8, 8], strides = [1, 1]} : vector<32x16xf32> to vector<8x8xf32>
    %cst_10 = arith.constant dense<0.000000e+00> : vector<8x8xf32>
    %22 = tpu.matmul %20, %21, %cst_10 {dimension_numbers = #tpu.dot_dimension_numbers<[1], [0], [0], [1], [0, 0, 1, 1], [], []>} : vector<8x8xf32>, vector<8x8xf32>, vector<8x8xf32> -> vector<8x8xf32>
    %23 = vector.extract_strided_slice %7 {offsets = [8, 0], sizes = [8, 8], strides = [1, 1]} : vector<16x32xf32> to vector<8x8xf32>
    %24 = vector.extract_strided_slice %10 {offsets = [0, 8], sizes = [8, 8], strides = [1, 1]} : vector<32x16xf32> to vector<8x8xf32>
    %cst_11 = arith.constant dense<0.000000e+00> : vector<8x8xf32>
    %25 = tpu.matmul %23, %24, %cst_11 {dimension_numbers = #tpu.dot_dimension_numbers<[1], [0], [0], [1], [0, 0, 1, 1], [], []>} : vector<8x8xf32>, vector<8x8xf32>, vector<8x8xf32> -> vector<8x8xf32>
    %26 = vector.extract_strided_slice %7 {offsets = [8, 8], sizes = [8, 8], strides = [1, 1]} : vector<16x32xf32> to vector<8x8xf32>
    %27 = vector.extract_strided_slice %10 {offsets = [8, 8], sizes = [8, 8], strides = [1, 1]} : vector<32x16xf32> to vector<8x8xf32>
    %cst_12 = arith.constant dense<0.000000e+00> : vector<8x8xf32>
    %28 = tpu.matmul %26, %27, %cst_12 {dimension_numbers = #tpu.dot_dimension_numbers<[1], [0], [0], [1], [0, 0, 1, 1], [], []>} : vector<8x8xf32>, vector<8x8xf32>, vector<8x8xf32> -> vector<8x8xf32>
    %29 = vector.extract_strided_slice %7 {offsets = [8, 16], sizes = [8, 8], strides = [1, 1]} : vector<16x32xf32> to vector<8x8xf32>
    %30 = vector.extract_strided_slice %10 {offsets = [16, 8], sizes = [8, 8], strides = [1, 1]} : vector<32x16xf32> to vector<8x8xf32>
    %cst_13 = arith.constant dense<0.000000e+00> : vector<8x8xf32>
    %31 = tpu.matmul %29, %30, %cst_13 {dimension_numbers = #tpu.dot_dimension_numbers<[1], [0], [0], [1], [0, 0, 1, 1], [], []>} : vector<8x8xf32>, vector<8x8xf32>, vector<8x8xf32> -> vector<8x8xf32>
    %32 = vector.extract_strided_slice %7 {offsets = [8, 24], sizes = [8, 8], strides = [1, 1]} : vector<16x32xf32> to vector<8x8xf32>
    %33 = vector.extract_strided_slice %10 {offsets = [24, 8], sizes = [8, 8], strides = [1, 1]} : vector<32x16xf32> to vector<8x8xf32>
    %cst_14 = arith.constant dense<0.000000e+00> : vector<8x8xf32>
    %34 = tpu.matmul %32, %33, %cst_14 {dimension_numbers = #tpu.dot_dimension_numbers<[1], [0], [0], [1], [0, 0, 1, 1], [], []>} : vector<8x8xf32>, vector<8x8xf32>, vector<8x8xf32> -> vector<8x8xf32>
    %35 = tpu.concatenate %13, %16, %19, %22, %25, %28, %31, %34 in 0 : vector<8x8xf32>, vector<8x8xf32>, vector<8x8xf32>, vector<8x8xf32>, vector<8x8xf32>, vector<8x8xf32>, vector<8x8xf32>, vector<8x8xf32> -> vector<64x8xf32>
    %36 = arith.addf %35, %1 : vector<64x8xf32>
    %cst_15 = arith.constant dense<0xFF800000> : vector<64xf32>
    %37 = vector.multi_reduction <maximumf>, %36, %cst_15 [1] : vector<64x8xf32> to vector<64xf32>
    %38 = vector.shape_cast %37 : vector<64xf32> to vector<64x1xf32>
    %39 = vector.broadcast %38 : vector<64x1xf32> to vector<64x8xf32>
    %40 = arith.subf %36, %39 : vector<64x8xf32>
    %41 = math.exp %40 : vector<64x8xf32>
    %cst_16 = arith.constant dense<0.000000e+00> : vector<64xf32>
    %42 = vector.multi_reduction <add>, %41, %cst_16 [1] : vector<64x8xf32> to vector<64xf32>
    %43 = vector.shape_cast %42 : vector<64xf32> to vector<64x1xf32>
    %44 = tpu.reciprocal %43 : vector<64x1xf32> -> vector<64x1xf32>
    %45 = vector.broadcast %44 : vector<64x1xf32> to vector<64x8xf32>
    %46 = arith.mulf %41, %45 : vector<64x8xf32>
    %47 = vector.extract_strided_slice %46 {offsets = [0, 0], sizes = [8, 8], strides = [1, 1]} : vector<64x8xf32> to vector<8x8xf32>
    %48 = vector.extract_strided_slice %9 {offsets = [0, 0], sizes = [8, 8], strides = [1, 1]} : vector<16x32xf32> to vector<8x8xf32>
    %cst_17 = arith.constant dense<0.000000e+00> : vector<8x8xf32>
    %49 = tpu.matmul %47, %48, %cst_17 {dimension_numbers = #tpu.dot_dimension_numbers<[1], [0], [0], [1], [0, 0, 1, 1], [], []>} : vector<8x8xf32>, vector<8x8xf32>, vector<8x8xf32> -> vector<8x8xf32>
    %50 = vector.extract_strided_slice %46 {offsets = [8, 0], sizes = [8, 8], strides = [1, 1]} : vector<64x8xf32> to vector<8x8xf32>
    %51 = vector.extract_strided_slice %9 {offsets = [0, 8], sizes = [8, 8], strides = [1, 1]} : vector<16x32xf32> to vector<8x8xf32>
    %cst_18 = arith.constant dense<0.000000e+00> : vector<8x8xf32>
    %52 = tpu.matmul %50, %51, %cst_18 {dimension_numbers = #tpu.dot_dimension_numbers<[1], [0], [0], [1], [0, 0, 1, 1], [], []>} : vector<8x8xf32>, vector<8x8xf32>, vector<8x8xf32> -> vector<8x8xf32>
    %53 = vector.extract_strided_slice %46 {offsets = [16, 0], sizes = [8, 8], strides = [1, 1]} : vector<64x8xf32> to vector<8x8xf32>
    %54 = vector.extract_strided_slice %9 {offsets = [0, 16], sizes = [8, 8], strides = [1, 1]} : vector<16x32xf32> to vector<8x8xf32>
    %cst_19 = arith.constant dense<0.000000e+00> : vector<8x8xf32>
    %55 = tpu.matmul %53, %54, %cst_19 {dimension_numbers = #tpu.dot_dimension_numbers<[1], [0], [0], [1], [0, 0, 1, 1], [], []>} : vector<8x8xf32>, vector<8x8xf32>, vector<8x8xf32> -> vector<8x8xf32>
    %56 = vector.extract_strided_slice %46 {offsets = [24, 0], sizes = [8, 8], strides = [1, 1]} : vector<64x8xf32> to vector<8x8xf32>
    %57 = vector.extract_strided_slice %9 {offsets = [0, 24], sizes = [8, 8], strides = [1, 1]} : vector<16x32xf32> to vector<8x8xf32>
    %cst_20 = arith.constant dense<0.000000e+00> : vector<8x8xf32>
    %58 = tpu.matmul %56, %57, %cst_20 {dimension_numbers = #tpu.dot_dimension_numbers<[1], [0], [0], [1], [0, 0, 1, 1], [], []>} : vector<8x8xf32>, vector<8x8xf32>, vector<8x8xf32> -> vector<8x8xf32>
    %59 = tpu.concatenate %49, %52, %55, %58 in 1 : vector<8x8xf32>, vector<8x8xf32>, vector<8x8xf32>, vector<8x8xf32> -> vector<8x32xf32>
    %60 = tpu.concatenate %47, %50, %53, %56 in 1 : vector<8x8xf32>, vector<8x8xf32>, vector<8x8xf32>, vector<8x8xf32> -> vector<8x32xf32>
    %61 = vector.extract_strided_slice %46 {offsets = [32, 0], sizes = [8, 8], strides = [1, 1]} : vector<64x8xf32> to vector<8x8xf32>
    %62 = vector.extract_strided_slice %9 {offsets = [8, 0], sizes = [8, 8], strides = [1, 1]} : vector<16x32xf32> to vector<8x8xf32>
    %cst_21 = arith.constant dense<0.000000e+00> : vector<8x8xf32>
    %63 = tpu.matmul %61, %62, %cst_21 {dimension_numbers = #tpu.dot_dimension_numbers<[1], [0], [0], [1], [0, 0, 1, 1], [], []>} : vector<8x8xf32>, vector<8x8xf32>, vector<8x8xf32> -> vector<8x8xf32>
    %64 = vector.extract_strided_slice %46 {offsets = [40, 0], sizes = [8, 8], strides = [1, 1]} : vector<64x8xf32> to vector<8x8xf32>
    %65 = vector.extract_strided_slice %9 {offsets = [8, 8], sizes = [8, 8], strides = [1, 1]} : vector<16x32xf32> to vector<8x8xf32>
    %cst_22 = arith.constant dense<0.000000e+00> : vector<8x8xf32>
    %66 = tpu.matmul %64, %65, %cst_22 {dimension_numbers = #tpu.dot_dimension_numbers<[1], [0], [0], [1], [0, 0, 1, 1], [], []>} : vector<8x8xf32>, vector<8x8xf32>, vector<8x8xf32> -> vector<8x8xf32>
    %67 = vector.extract_strided_slice %46 {offsets = [48, 0], sizes = [8, 8], strides = [1, 1]} : vector<64x8xf32> to vector<8x8xf32>
    %68 = vector.extract_strided_slice %9 {offsets = [8, 16], sizes = [8, 8], strides = [1, 1]} : vector<16x32xf32> to vector<8x8xf32>
    %cst_23 = arith.constant dense<0.000000e+00> : vector<8x8xf32>
    %69 = tpu.matmul %67, %68, %cst_23 {dimension_numbers = #tpu.dot_dimension_numbers<[1], [0], [0], [1], [0, 0, 1, 1], [], []>} : vector<8x8xf32>, vector<8x8xf32>, vector<8x8xf32> -> vector<8x8xf32>
    %70 = vector.extract_strided_slice %46 {offsets = [56, 0], sizes = [8, 8], strides = [1, 1]} : vector<64x8xf32> to vector<8x8xf32>
    %71 = vector.extract_strided_slice %9 {offsets = [8, 24], sizes = [8, 8], strides = [1, 1]} : vector<16x32xf32> to vector<8x8xf32>
    %cst_24 = arith.constant dense<0.000000e+00> : vector<8x8xf32>
    %72 = tpu.matmul %70, %71, %cst_24 {dimension_numbers = #tpu.dot_dimension_numbers<[1], [0], [0], [1], [0, 0, 1, 1], [], []>} : vector<8x8xf32>, vector<8x8xf32>, vector<8x8xf32> -> vector<8x8xf32>
    %73 = tpu.concatenate %63, %66, %69, %72 in 1 : vector<8x8xf32>, vector<8x8xf32>, vector<8x8xf32>, vector<8x8xf32> -> vector<8x32xf32>
    %74 = tpu.concatenate %61, %64, %67, %70 in 1 : vector<8x8xf32>, vector<8x8xf32>, vector<8x8xf32>, vector<8x8xf32> -> vector<8x32xf32>
    %75 = tpu.concatenate %59, %73 in 0 : vector<8x32xf32>, vector<8x32xf32> -> vector<16x32xf32>
    %76 = tpu.concatenate %60, %74 in 0 : vector<8x32xf32>, vector<8x32xf32> -> vector<16x32xf32>
    %77 = vector.extract_strided_slice %2 {offsets = [0, 96], sizes = [32, 32], strides = [1, 1]} : vector<32x128xf32> to vector<32x32xf32>
    %cst_25 = arith.constant dense<0.000000e+00> : vector<16x32xf32>
    %78 = tpu.matmul %75, %77, %cst_25 {dimension_numbers = #tpu.dot_dimension_numbers<[1], [0], [0], [1], [0, 0, 1, 1], [], []>} : vector<16x32xf32>, vector<32x32xf32>, vector<16x32xf32> -> vector<16x32xf32>
    %79 = vector.extract_strided_slice %3 {offsets = [0, 96], sizes = [1, 32], strides = [1, 1]} : vector<1x128xf32> to vector<1x32xf32>
    %80 = vector.broadcast %79 : vector<1x32xf32> to vector<16x32xf32>
    %81 = arith.addf %78, %80 : vector<16x32xf32>
    %82 = arith.addf %81, %0 : vector<16x32xf32>
    %cst_26 = arith.constant dense<0.000000e+00> : vector<16xf32>
    %83 = vector.multi_reduction <add>, %82, %cst_26 [1] : vector<16x32xf32> to vector<16xf32>
    %84 = vector.shape_cast %83 : vector<16xf32> to vector<16x1xf32>
    %cst_27 = arith.constant 3.200000e+01 : f32
    %85 = vector.broadcast %cst_27 : f32 to vector<16x1xf32>
    %86 = arith.divf %84, %85 : vector<16x1xf32>
    %87 = vector.broadcast %86 : vector<16x1xf32> to vector<16x32xf32>
    %88 = arith.subf %82, %87 : vector<16x32xf32>
    %89 = arith.mulf %88, %88 : vector<16x32xf32>
    %cst_28 = arith.constant dense<0.000000e+00> : vector<16xf32>
    %90 = vector.multi_reduction <add>, %89, %cst_28 [1] : vector<16x32xf32> to vector<16xf32>
    %91 = vector.shape_cast %90 : vector<16xf32> to vector<16x1xf32>
    %cst_29 = arith.constant 3.200000e+01 : f32
    %92 = vector.broadcast %cst_29 : f32 to vector<16x1xf32>
    %93 = arith.divf %91, %92 : vector<16x1xf32>
    %94 = vector.broadcast %86 : vector<16x1xf32> to vector<16x32xf32>
    %95 = arith.subf %82, %94 : vector<16x32xf32>
    %cst_30 = arith.constant 9.99999974E-6 : f32
    %96 = vector.broadcast %cst_30 : f32 to vector<16x1xf32>
    %97 = arith.addf %93, %96 : vector<16x1xf32>
    %98 = math.rsqrt %97 : vector<16x1xf32>
    %99 = vector.broadcast %98 : vector<16x1xf32> to vector<16x32xf32>
    %100 = arith.mulf %95, %99 : vector<16x32xf32>
    %cst_31 = arith.constant 0.000000e+00 : f32
    %101 = vector.broadcast %cst_31 : f32 to vector<16x64xf32>
    %102 = tpu.concatenate %100, %76, %101 in 1 : vector<16x32xf32>, vector<16x32xf32>, vector<16x64xf32> -> vector<16x128xf32>
    %c0_32 = arith.constant 0 : index
    %c0_33 = arith.constant 0 : index
    %103 = vector.load %arg4[%c0_32, %c0_33] : memref<16x128xf32, #tpu.memory_space<vmem>>, vector<16x128xf32>
    tpu.vector_store %arg4[%c0_32, %c0_33], %102 {strides = array<i32>} : memref<16x128xf32, #tpu.memory_space<vmem>>, vector<16x128xf32>,
    return
  }
}

</mosaic_0001>

<llo_original>
// kernel: multi_head_attention.1
$region0: #{multi_head_attention.1}
  #allocation0 [shape = 'u32[]', space=smem, size = 0x4, offset = 0x4, fixed_abs, tag = 'smem constant byte address 0x4 - core index']
  #allocation1 [shape = 'u32[144,128]{1,0:T(1,128)}', space=vmem, size = 0x12000, scoped, tag = 'internal scratch']
  %s0 = inlined_call_operand.vmem [shape: f32[16,32], index: 0, kind: input, shape index: {}]
  %s1 = inlined_call_operand.vmem [shape: f32[64,8], index: 1, kind: input, shape index: {}]
  %s2 = inlined_call_operand.vmem [shape: f32[32,128], index: 2, kind: input, shape index: {}]
  %s3 = inlined_call_operand.vmem [shape: f32[1,128], index: 3, kind: input, shape index: {}]
  %s4 = inlined_call_operand.vmem [shape: f32[16,128], index: 4, kind: output, shape index: {}]
  %s5 = sld [smem:[#allocation0]]
  $region26: #{multi_head_attention.1} parent=0
    _
  %s7 = ssub.s32 1, %s5
  %s8 = scalar_select 0, %s7, %s5
  // Predicated region
  $region2: #{multi_head_attention.1} parent=0 // pred_check
    _
  $region3: #{multi_head_attention.1} parent=0 // pred_check_branch
    %10 = sbr.rel (0) target = $region5
  $region4: #{multi_head_attention.1} parent=0 // pred_region
    _
  $region5: #{multi_head_attention.1} parent=0 // pred_fallthru
    _
  // Predicated region
  $region6: #{multi_head_attention.1} parent=0 // pred_check
    _
  $region7: #{multi_head_attention.1} parent=0 // pred_check_branch
    %12 = sbr.rel (0) target = $region9
  $region8: #{multi_head_attention.1} parent=0 // pred_region
    _
  $region9: #{multi_head_attention.1} parent=0 // pred_fallthru
    _
  // Predicated region
  $region10: #{multi_head_attention.1} parent=0 // pred_check
    _
  $region11: #{multi_head_attention.1} parent=0 // pred_check_branch
    %14 = sbr.rel (0) target = $region13
  $region12: #{multi_head_attention.1} parent=0 // pred_region
    _
  $region13: #{multi_head_attention.1} parent=0 // pred_fallthru
    _
  // Predicated region
  $region14: #{multi_head_attention.1} parent=0 // pred_check
    _
  $region15: #{multi_head_attention.1} parent=0 // pred_check_branch
    %16 = sbr.rel (0) target = $region17
  $region16: #{multi_head_attention.1} parent=0 // pred_region
    _
  $region17: #{multi_head_attention.1} parent=0 // pred_fallthru
    _
  %v17 = vld [vmem:[%s0] sm:$0xff]
  %v18 = vld [vmem:[%s0 + $0x8] sm:$0xff]
  %v19 = vld [vmem:[%s1] sm:$0xff]
  %v20 = vld [vmem:[%s1 + $0x8] sm:$0xff]
  %v21 = vld [vmem:[%s1 + $0x10] sm:$0xff]
  %v22 = vld [vmem:[%s1 + $0x18] sm:$0xff]
  %v23 = vld [vmem:[%s1 + $0x20] sm:$0xff]
  %v24 = vld [vmem:[%s1 + $0x28] sm:$0xff]
  %v25 = vld [vmem:[%s1 + $0x30] sm:$0xff]
  %v26 = vld [vmem:[%s1 + $0x38] sm:$0xff]
  %v27 = vld [vmem:[%s2] sm:$0xff]
  %v28 = vld [vmem:[%s2 + $0x8] sm:$0xff]
  %v29 = vld [vmem:[%s2 + $0x10] sm:$0xff]
  %v30 = vld [vmem:[%s2 + $0x18] sm:$0xff]
  %v31 = vld [vmem:[%s3] sm:$0x1]
  %v33 = vlaneseq
  %v34 = vshrl.u32 %v33, 7
  %v35 = vsub.s32 0, %v34
  %v36 = vrot.slane %v31, %v35
  %vm38 = vcmask 261120
  %v40 = vsel %vm38, %v17, 0
  %v43 = vsel %vm38, %v18, 0
  %45 = vmatprep.subr.mxu0 0.0
  %46 = vmatpush1.msra.mxu0 0.0
  %47 = vmatprep.subr.mxu0 0.0
  %48 = vmatpush1.msra.mxu0 0.0
  %49 = vmatprep.subr.mxu0 0.0
  %50 = vmatpush1.msra.mxu0 0.0
  %51 = vmatprep.subr.mxu0 0.0
  %52 = vmatpush1.msra.mxu0 0.0
  %53 = vmatprep.subr.mxu0 0.0
  %54 = vmatpush1.msra.mxu0 0.0
  %55 = vmatprep.subr.mxu0 0.0
  %56 = vmatpush1.msra.mxu0 0.0
  %57 = vmatprep.subr.mxu0 0.0
  %58 = vmatpush1.msra.mxu0 0.0
  %59 = vmatprep.subr.mxu0 0.0
  %60 = vmatpush1.msra.mxu0 0.0
  %61 = vmatprep.subr.mxu0 0.0
  %62 = vmatpush1.msra.mxu0 0.0
  %63 = vmatprep.subr.mxu0 0.0
  %64 = vmatpush1.msra.mxu0 0.0
  %65 = vmatprep.subr.mxu0 0.0
  %66 = vmatpush1.msra.mxu0 0.0
  %67 = vmatprep.subr.mxu0 0.0
  %68 = vmatpush1.msra.mxu0 0.0
  %69 = vmatprep.subr.mxu0 0.0
  %70 = vmatpush1.msra.mxu0 %v30
  %71 = vmatprep.subr.mxu0 0.0
  %72 = vmatpush1.msra.mxu0 %v29
  %73 = vmatprep.subr.mxu0 0.0
  %74 = vmatpush1.msra.mxu0 %v28
  %75 = vmatprep.subr.mxu0 0.0
  %76 = vmatpush1.msra.mxu0 %v27
  %77 = vmatprep.subr.mxu0 0.0
  %78 = vmatpush2.msra.mxu0 0.0
  %79 = vmatprep.subr.mxu0 0.0
  %80 = vmatpush2.msra.mxu0 0.0
  %81 = vmatprep.subr.mxu0 0.0
  %82 = vmatpush2.msra.mxu0 0.0
  %83 = vmatprep.subr.mxu0 0.0
  %84 = vmatpush2.msra.mxu0 0.0
  %85 = vmatprep.subr.mxu0 0.0
  %86 = vmatpush2.msra.mxu0 0.0
  %87 = vmatprep.subr.mxu0 0.0
  %88 = vmatpush2.msra.mxu0 0.0
  %89 = vmatprep.subr.mxu0 0.0
  %90 = vmatpush2.msra.mxu0 0.0
  %91 = vmatprep.subr.mxu0 0.0
  %92 = vmatpush2.msra.mxu0 0.0
  %93 = vmatprep.subr.mxu0 0.0
  %94 = vmatpush2.msra.mxu0 0.0
  %95 = vmatprep.subr.mxu0 0.0
  %96 = vmatpush2.msra.mxu0 0.0
  %97 = vmatprep.subr.mxu0 0.0
  %98 = vmatpush2.msra.mxu0 0.0
  %99 = vmatprep.subr.mxu0 0.0
  %100 = vmatpush2.msra.mxu0 0.0
  %101 = vmatprep.subr.mxu0 0.0
  %102 = vmatpush2.msra.mxu0 0.0
  %103 = vmatprep.subr.mxu0 0.0
  %104 = vmatpush2.msra.mxu0 0.0
  %105 = vmatprep.subr.mxu0 0.0
  %106 = vmatpush2.msra.mxu0 0.0
  %107 = vmatprep.subr.mxu0 0.0
  %108 = vmatpush2.msra.mxu0 0.0
  %109 = vmatprep.mubr.f32.mxu0 0.0
  %110 = vmatmul.mubr.f32.gmra.mxu0 %v40
  %v111 = vpop.f32.mrf.mxu0
  %v112 = vadd.f32 %v36, %v111
  %v113 = vpop.f32.mrf.mxu0
  %114 = vmatprep.mubr.f32.mxu0 0.0
  %115 = vmatmul.mubr.f32.gmra.mxu0 %v43
  %v116 = vpop.f32.mrf.mxu0
  %v117 = vadd.f32 %v36, %v116
  %v118 = vpop.f32.mrf.mxu0
  %119 = vdwg.mxu0
  %121 = vrot.lane.b32.xlu0 %v112, 96
  %v122 = vpop.permute.xlu0 %121
  %vm123 = vcmask 64512
  %v124 = vsel %vm123, %v112, 0
  %v126 = vsel %vm123, %v122, 0
  %128 = vmatprep.subr.mxu0 0.0
  %129 = vmatpush1.xpose.msra.mxu0 0.0
  %130 = vmatprep.subr.mxu0 0.0
  %131 = vmatpush1.xpose.msra.mxu0 0.0
  %132 = vmatprep.subr.mxu0 0.0
  %133 = vmatpush1.xpose.msra.mxu0 0.0
  %134 = vmatprep.subr.mxu0 0.0
  %135 = vmatpush1.xpose.msra.mxu0 0.0
  %136 = vmatprep.subr.mxu0 0.0
  %137 = vmatpush1.xpose.msra.mxu0 0.0
  %138 = vmatprep.subr.mxu0 0.0
  %139 = vmatpush1.xpose.msra.mxu0 0.0
  %140 = vmatprep.subr.mxu0 0.0
  %141 = vmatpush1.xpose.msra.mxu0 0.0
  %142 = vmatprep.subr.mxu0 0.0
  %143 = vmatpush1.xpose.msra.mxu0 0.0
  %144 = vmatprep.subr.mxu0 0.0
  %145 = vmatpush1.xpose.msra.mxu0 0.0
  %146 = vmatprep.subr.mxu0 0.0
  %147 = vmatpush1.xpose.msra.mxu0 0.0
  %148 = vmatprep.subr.mxu0 0.0
  %149 = vmatpush1.xpose.msra.mxu0 0.0
  %150 = vmatprep.subr.mxu0 0.0
  %151 = vmatpush1.xpose.msra.mxu0 0.0
  %152 = vmatprep.subr.mxu0 0.0
  %153 = vmatpush1.xpose.msra.mxu0 0.0
  %154 = vmatprep.subr.mxu0 0.0
  %155 = vmatpush1.xpose.msra.mxu0 0.0
  %156 = vmatprep.subr.mxu0 0.0
  %157 = vmatpush1.xpose.msra.mxu0 0.0
  %158 = vmatprep.subr.mxu0 0.0
  %159 = vmatpush1.xpose.msra.mxu0 %v126
  %160 = vmatprep.subr.mxu0 0.0
  %161 = vmatpush2.xpose.msra.mxu0 0.0
  %162 = vmatprep.subr.mxu0 0.0
  %163 = vmatpush2.xpose.msra.mxu0 0.0
  %164 = vmatprep.subr.mxu0 0.0
  %165 = vmatpush2.xpose.msra.mxu0 0.0
  %166 = vmatprep.subr.mxu0 0.0
  %167 = vmatpush2.xpose.msra.mxu0 0.0
  %168 = vmatprep.subr.mxu0 0.0
  %169 = vmatpush2.xpose.msra.mxu0 0.0
  %170 = vmatprep.subr.mxu0 0.0
  %171 = vmatpush2.xpose.msra.mxu0 0.0
  %172 = vmatprep.subr.mxu0 0.0
  %173 = vmatpush2.xpose.msra.mxu0 0.0
  %174 = vmatprep.subr.mxu0 0.0
  %175 = vmatpush2.xpose.msra.mxu0 0.0
  %176 = vmatprep.subr.mxu0 0.0
  %177 = vmatpush2.xpose.msra.mxu0 0.0
  %178 = vmatprep.subr.mxu0 0.0
  %179 = vmatpush2.xpose.msra.mxu0 0.0
  %180 = vmatprep.subr.mxu0 0.0
  %181 = vmatpush2.xpose.msra.mxu0 0.0
  %182 = vmatprep.subr.mxu0 0.0
  %183 = vmatpush2.xpose.msra.mxu0 0.0
  %184 = vmatprep.subr.mxu0 0.0
  %185 = vmatpush2.xpose.msra.mxu0 0.0
  %186 = vmatprep.subr.mxu0 0.0
  %187 = vmatpush2.xpose.msra.mxu0 0.0
  %188 = vmatprep.subr.mxu0 0.0
  %189 = vmatpush2.xpose.msra.mxu0 0.0
  %190 = vmatprep.subr.mxu0 0.0
  %191 = vmatpush2.xpose.msra.mxu0 0.0
  %192 = vmatprep.mubr.f32.mxu0 0.0
  %193 = vmatmul.mubr.f32.gmra.mxu0 %v124
  %v194 = vpop.f32.mrf.mxu0
  %v195 = vadd.f32 0.0, %v194
  %v196 = vpop.f32.mrf.mxu0
  %197 = vdwg.mxu0
  %198 = vrot.lane.b32.xlu0 %v112, 120
  %v199 = vpop.permute.xlu0 %198
  %200 = vrot.lane.b32.xlu0 %v112, 88
  %v201 = vpop.permute.xlu0 %200
  %v202 = vsel %vm123, %v199, 0
  %v204 = vsel %vm123, %v201, 0
  %206 = vmatprep.subr.mxu0 0.0
  %207 = vmatpush1.xpose.msra.mxu0 0.0
  %208 = vmatprep.subr.mxu0 0.0
  %209 = vmatpush1.xpose.msra.mxu0 0.0
  %210 = vmatprep.subr.mxu0 0.0
  %211 = vmatpush1.xpose.msra.mxu0 0.0
  %212 = vmatprep.subr.mxu0 0.0
  %213 = vmatpush1.xpose.msra.mxu0 0.0
  %214 = vmatprep.subr.mxu0 0.0
  %215 = vmatpush1.xpose.msra.mxu0 0.0
  %216 = vmatprep.subr.mxu0 0.0
  %217 = vmatpush1.xpose.msra.mxu0 0.0
  %218 = vmatprep.subr.mxu0 0.0
  %219 = vmatpush1.xpose.msra.mxu0 0.0
  %220 = vmatprep.subr.mxu0 0.0
  %221 = vmatpush1.xpose.msra.mxu0 0.0
  %222 = vmatprep.subr.mxu0 0.0
  %223 = vmatpush1.xpose.msra.mxu0 0.0
  %224 = vmatprep.subr.mxu0 0.0
  %225 = vmatpush1.xpose.msra.mxu0 0.0
  %226 = vmatprep.subr.mxu0 0.0
  %227 = vmatpush1.xpose.msra.mxu0 0.0
  %228 = vmatprep.subr.mxu0 0.0
  %229 = vmatpush1.xpose.msra.mxu0 0.0
  %230 = vmatprep.subr.mxu0 0.0
  %231 = vmatpush1.xpose.msra.mxu0 0.0
  %232 = vmatprep.subr.mxu0 0.0
  %233 = vmatpush1.xpose.msra.mxu0 0.0
  %234 = vmatprep.subr.mxu0 0.0
  %235 = vmatpush1.xpose.msra.mxu0 0.0
  %236 = vmatprep.subr.mxu0 0.0
  %237 = vmatpush1.xpose.msra.mxu0 %v204
  %238 = vmatprep.subr.mxu0 0.0
  %239 = vmatpush2.xpose.msra.mxu0 0.0
  %240 = vmatprep.subr.mxu0 0.0
  %241 = vmatpush2.xpose.msra.mxu0 0.0
  %242 = vmatprep.subr.mxu0 0.0
  %243 = vmatpush2.xpose.msra.mxu0 0.0
  %244 = vmatprep.subr.mxu0 0.0
  %245 = vmatpush2.xpose.msra.mxu0 0.0
  %246 = vmatprep.subr.mxu0 0.0
  %247 = vmatpush2.xpose.msra.mxu0 0.0
  %248 = vmatprep.subr.mxu0 0.0
  %249 = vmatpush2.xpose.msra.mxu0 0.0
  %250 = vmatprep.subr.mxu0 0.0
  %251 = vmatpush2.xpose.msra.mxu0 0.0
  %252 = vmatprep.subr.mxu0 0.0
  %253 = vmatpush2.xpose.msra.mxu0 0.0
  %254 = vmatprep.subr.mxu0 0.0
  %255 = vmatpush2.xpose.msra.mxu0 0.0
  %256 = vmatprep.subr.mxu0 0.0
  %257 = vmatpush2.xpose.msra.mxu0 0.0
  %258 = vmatprep.subr.mxu0 0.0
  %259 = vmatpush2.xpose.msra.mxu0 0.0
  %260 = vmatprep.subr.mxu0 0.0
  %261 = vmatpush2.xpose.msra.mxu0 0.0
  %262 = vmatprep.subr.mxu0 0.0
  %263 = vmatpush2.xpose.msra.mxu0 0.0
  %264 = vmatprep.subr.mxu0 0.0
  %265 = vmatpush2.xpose.msra.mxu0 0.0
  %266 = vmatprep.subr.mxu0 0.0
  %267 = vmatpush2.xpose.msra.mxu0 0.0
  %268 = vmatprep.subr.mxu0 0.0
  %269 = vmatpush2.xpose.msra.mxu0 0.0
  %270 = vmatprep.mubr.f32.mxu0 0.0
  %271 = vmatmul.mubr.f32.gmra.mxu0 %v202
  %v272 = vpop.f32.mrf.mxu0
  %v273 = vadd.f32 0.0, %v272
  %v274 = vpop.f32.mrf.mxu0
  %275 = vdwg.mxu0
  %276 = vrot.lane.b32.xlu0 %v112, 112
  %v277 = vpop.permute.xlu0 %276
  %278 = vrot.lane.b32.xlu0 %v112, 80
  %v279 = vpop.permute.xlu0 %278
  %v280 = vsel %vm123, %v277, 0
  %v282 = vsel %vm123, %v279, 0
  %284 = vmatprep.subr.mxu0 0.0
  %285 = vmatpush1.xpose.msra.mxu0 0.0
  %286 = vmatprep.subr.mxu0 0.0
  %287 = vmatpush1.xpose.msra.mxu0 0.0
  %288 = vmatprep.subr.mxu0 0.0
  %289 = vmatpush1.xpose.msra.mxu0 0.0
  %290 = vmatprep.subr.mxu0 0.0
  %291 = vmatpush1.xpose.msra.mxu0 0.0
  %292 = vmatprep.subr.mxu0 0.0
  %293 = vmatpush1.xpose.msra.mxu0 0.0
  %294 = vmatprep.subr.mxu0 0.0
  %295 = vmatpush1.xpose.msra.mxu0 0.0
  %296 = vmatprep.subr.mxu0 0.0
  %297 = vmatpush1.xpose.msra.mxu0 0.0
  %298 = vmatprep.subr.mxu0 0.0
  %299 = vmatpush1.xpose.msra.mxu0 0.0
  %300 = vmatprep.subr.mxu0 0.0
  %301 = vmatpush1.xpose.msra.mxu0 0.0
  %302 = vmatprep.subr.mxu0 0.0
  %303 = vmatpush1.xpose.msra.mxu0 0.0
  %304 = vmatprep.subr.mxu0 0.0
  %305 = vmatpush1.xpose.msra.mxu0 0.0
  %306 = vmatprep.subr.mxu0 0.0
  %307 = vmatpush1.xpose.msra.mxu0 0.0
  %308 = vmatprep.subr.mxu0 0.0
  %309 = vmatpush1.xpose.msra.mxu0 0.0
  %310 = vmatprep.subr.mxu0 0.0
  %311 = vmatpush1.xpose.msra.mxu0 0.0
  %312 = vmatprep.subr.mxu0 0.0
  %313 = vmatpush1.xpose.msra.mxu0 0.0
  %314 = vmatprep.subr.mxu0 0.0
  %315 = vmatpush1.xpose.msra.mxu0 %v282
  %316 = vmatprep.subr.mxu0 0.0
  %317 = vmatpush2.xpose.msra.mxu0 0.0
  %318 = vmatprep.subr.mxu0 0.0
  %319 = vmatpush2.xpose.msra.mxu0 0.0
  %320 = vmatprep.subr.mxu0 0.0
  %321 = vmatpush2.xpose.msra.mxu0 0.0
  %322 = vmatprep.subr.mxu0 0.0
  %323 = vmatpush2.xpose.msra.mxu0 0.0
  %324 = vmatprep.subr.mxu0 0.0
  %325 = vmatpush2.xpose.msra.mxu0 0.0
  %326 = vmatprep.subr.mxu0 0.0
  %327 = vmatpush2.xpose.msra.mxu0 0.0
  %328 = vmatprep.subr.mxu0 0.0
  %329 = vmatpush2.xpose.msra.mxu0 0.0
  %330 = vmatprep.subr.mxu0 0.0
  %331 = vmatpush2.xpose.msra.mxu0 0.0
  %332 = vmatprep.subr.mxu0 0.0
  %333 = vmatpush2.xpose.msra.mxu0 0.0
  %334 = vmatprep.subr.mxu0 0.0
  %335 = vmatpush2.xpose.msra.mxu0 0.0
  %336 = vmatprep.subr.mxu0 0.0
  %337 = vmatpush2.xpose.msra.mxu0 0.0
  %338 = vmatprep.subr.mxu0 0.0
  %339 = vmatpush2.xpose.msra.mxu0 0.0
  %340 = vmatprep.subr.mxu0 0.0
  %341 = vmatpush2.xpose.msra.mxu0 0.0
  %342 = vmatprep.subr.mxu0 0.0
  %343 = vmatpush2.xpose.msra.mxu0 0.0
  %344 = vmatprep.subr.mxu0 0.0
  %345 = vmatpush2.xpose.msra.mxu0 0.0
  %346 = vmatprep.subr.mxu0 0.0
  %347 = vmatpush2.xpose.msra.mxu0 0.0
  %348 = vmatprep.mubr.f32.mxu0 0.0
  %349 = vmatmul.mubr.f32.gmra.mxu0 %v280
  %v350 = vpop.f32.mrf.mxu0
  %v351 = vadd.f32 0.0, %v350
  %v352 = vpop.f32.mrf.mxu0
  %353 = vdwg.mxu0
  %354 = vrot.lane.b32.xlu0 %v112, 104
  %v355 = vpop.permute.xlu0 %354
  %356 = vrot.lane.b32.xlu0 %v112, 72
  %v357 = vpop.permute.xlu0 %356
  %v358 = vsel %vm123, %v355, 0
  %v360 = vsel %vm123, %v357, 0
  %362 = vmatprep.subr.mxu0 0.0
  %363 = vmatpush1.xpose.msra.mxu0 0.0
  %364 = vmatprep.subr.mxu0 0.0
  %365 = vmatpush1.xpose.msra.mxu0 0.0
  %366 = vmatprep.subr.mxu0 0.0
  %367 = vmatpush1.xpose.msra.mxu0 0.0
  %368 = vmatprep.subr.mxu0 0.0
  %369 = vmatpush1.xpose.msra.mxu0 0.0
  %370 = vmatprep.subr.mxu0 0.0
  %371 = vmatpush1.xpose.msra.mxu0 0.0
  %372 = vmatprep.subr.mxu0 0.0
  %373 = vmatpush1.xpose.msra.mxu0 0.0
  %374 = vmatprep.subr.mxu0 0.0
  %375 = vmatpush1.xpose.msra.mxu0 0.0
  %376 = vmatprep.subr.mxu0 0.0
  %377 = vmatpush1.xpose.msra.mxu0 0.0
  %378 = vmatprep.subr.mxu0 0.0
  %379 = vmatpush1.xpose.msra.mxu0 0.0
  %380 = vmatprep.subr.mxu0 0.0
  %381 = vmatpush1.xpose.msra.mxu0 0.0
  %382 = vmatprep.subr.mxu0 0.0
  %383 = vmatpush1.xpose.msra.mxu0 0.0
  %384 = vmatprep.subr.mxu0 0.0
  %385 = vmatpush1.xpose.msra.mxu0 0.0
  %386 = vmatprep.subr.mxu0 0.0
  %387 = vmatpush1.xpose.msra.mxu0 0.0
  %388 = vmatprep.subr.mxu0 0.0
  %389 = vmatpush1.xpose.msra.mxu0 0.0
  %390 = vmatprep.subr.mxu0 0.0
  %391 = vmatpush1.xpose.msra.mxu0 0.0
  %392 = vmatprep.subr.mxu0 0.0
  %393 = vmatpush1.xpose.msra.mxu0 %v360
  %394 = vmatprep.subr.mxu0 0.0
  %395 = vmatpush2.xpose.msra.mxu0 0.0
  %396 = vmatprep.subr.mxu0 0.0
  %397 = vmatpush2.xpose.msra.mxu0 0.0
  %398 = vmatprep.subr.mxu0 0.0
  %399 = vmatpush2.xpose.msra.mxu0 0.0
  %400 = vmatprep.subr.mxu0 0.0
  %401 = vmatpush2.xpose.msra.mxu0 0.0
  %402 = vmatprep.subr.mxu0 0.0
  %403 = vmatpush2.xpose.msra.mxu0 0.0
  %404 = vmatprep.subr.mxu0 0.0
  %405 = vmatpush2.xpose.msra.mxu0 0.0
  %406 = vmatprep.subr.mxu0 0.0
  %407 = vmatpush2.xpose.msra.mxu0 0.0
  %408 = vmatprep.subr.mxu0 0.0
  %409 = vmatpush2.xpose.msra.mxu0 0.0
  %410 = vmatprep.subr.mxu0 0.0
  %411 = vmatpush2.xpose.msra.mxu0 0.0
  %412 = vmatprep.subr.mxu0 0.0
  %413 = vmatpush2.xpose.msra.mxu0 0.0
  %414 = vmatprep.subr.mxu0 0.0
  %415 = vmatpush2.xpose.msra.mxu0 0.0
  %416 = vmatprep.subr.mxu0 0.0
  %417 = vmatpush2.xpose.msra.mxu0 0.0
  %418 = vmatprep.subr.mxu0 0.0
  %419 = vmatpush2.xpose.msra.mxu0 0.0
  %420 = vmatprep.subr.mxu0 0.0
  %421 = vmatpush2.xpose.msra.mxu0 0.0
  %422 = vmatprep.subr.mxu0 0.0
  %423 = vmatpush2.xpose.msra.mxu0 0.0
  %424 = vmatprep.subr.mxu0 0.0
  %425 = vmatpush2.xpose.msra.mxu0 0.0
  %426 = vmatprep.mubr.f32.mxu0 0.0
  %427 = vmatmul.mubr.f32.gmra.mxu0 %v358
  %v428 = vpop.f32.mrf.mxu0
  %v429 = vadd.f32 0.0, %v428
  %v430 = vpop.f32.mrf.mxu0
  %431 = vdwg.mxu0
  %433 = vrot.lane.b32.xlu0 %v117, 96
  %v434 = vpop.permute.xlu0 %433
  %v435 = vsel %vm123, %v117, 0
  %v437 = vsel %vm123, %v434, 0
  %439 = vmatprep.subr.mxu0 0.0
  %440 = vmatpush1.xpose.msra.mxu0 0.0
  %441 = vmatprep.subr.mxu0 0.0
  %442 = vmatpush1.xpose.msra.mxu0 0.0
  %443 = vmatprep.subr.mxu0 0.0
  %444 = vmatpush1.xpose.msra.mxu0 0.0
  %445 = vmatprep.subr.mxu0 0.0
  %446 = vmatpush1.xpose.msra.mxu0 0.0
  %447 = vmatprep.subr.mxu0 0.0
  %448 = vmatpush1.xpose.msra.mxu0 0.0
  %449 = vmatprep.subr.mxu0 0.0
  %450 = vmatpush1.xpose.msra.mxu0 0.0
  %451 = vmatprep.subr.mxu0 0.0
  %452 = vmatpush1.xpose.msra.mxu0 0.0
  %453 = vmatprep.subr.mxu0 0.0
  %454 = vmatpush1.xpose.msra.mxu0 0.0
  %455 = vmatprep.subr.mxu0 0.0
  %456 = vmatpush1.xpose.msra.mxu0 0.0
  %457 = vmatprep.subr.mxu0 0.0
  %458 = vmatpush1.xpose.msra.mxu0 0.0
  %459 = vmatprep.subr.mxu0 0.0
  %460 = vmatpush1.xpose.msra.mxu0 0.0
  %461 = vmatprep.subr.mxu0 0.0
  %462 = vmatpush1.xpose.msra.mxu0 0.0
  %463 = vmatprep.subr.mxu0 0.0
  %464 = vmatpush1.xpose.msra.mxu0 0.0
  %465 = vmatprep.subr.mxu0 0.0
  %466 = vmatpush1.xpose.msra.mxu0 0.0
  %467 = vmatprep.subr.mxu0 0.0
  %468 = vmatpush1.xpose.msra.mxu0 0.0
  %469 = vmatprep.subr.mxu0 0.0
  %470 = vmatpush1.xpose.msra.mxu0 %v437
  %471 = vmatprep.subr.mxu0 0.0
  %472 = vmatpush2.xpose.msra.mxu0 0.0
  %473 = vmatprep.subr.mxu0 0.0
  %474 = vmatpush2.xpose.msra.mxu0 0.0
  %475 = vmatprep.subr.mxu0 0.0
  %476 = vmatpush2.xpose.msra.mxu0 0.0
  %477 = vmatprep.subr.mxu0 0.0
  %478 = vmatpush2.xpose.msra.mxu0 0.0
  %479 = vmatprep.subr.mxu0 0.0
  %480 = vmatpush2.xpose.msra.mxu0 0.0
  %481 = vmatprep.subr.mxu0 0.0
  %482 = vmatpush2.xpose.msra.mxu0 0.0
  %483 = vmatprep.subr.mxu0 0.0
  %484 = vmatpush2.xpose.msra.mxu0 0.0
  %485 = vmatprep.subr.mxu0 0.0
  %486 = vmatpush2.xpose.msra.mxu0 0.0
  %487 = vmatprep.subr.mxu0 0.0
  %488 = vmatpush2.xpose.msra.mxu0 0.0
  %489 = vmatprep.subr.mxu0 0.0
  %490 = vmatpush2.xpose.msra.mxu0 0.0
  %491 = vmatprep.subr.mxu0 0.0
  %492 = vmatpush2.xpose.msra.mxu0 0.0
  %493 = vmatprep.subr.mxu0 0.0
  %494 = vmatpush2.xpose.msra.mxu0 0.0
  %495 = vmatprep.subr.mxu0 0.0
  %496 = vmatpush2.xpose.msra.mxu0 0.0
  %497 = vmatprep.subr.mxu0 0.0
  %498 = vmatpush2.xpose.msra.mxu0 0.0
  %499 = vmatprep.subr.mxu0 0.0
  %500 = vmatpush2.xpose.msra.mxu0 0.0
  %501 = vmatprep.subr.mxu0 0.0
  %502 = vmatpush2.xpose.msra.mxu0 0.0
  %503 = vmatprep.mubr.f32.mxu0 0.0
  %504 = vmatmul.mubr.f32.gmra.mxu0 %v435
  %v505 = vpop.f32.mrf.mxu0
  %v506 = vadd.f32 0.0, %v505
  %v507 = vpop.f32.mrf.mxu0
  %508 = vdwg.mxu0
  %509 = vrot.lane.b32.xlu0 %v117, 120
  %v510 = vpop.permute.xlu0 %509
  %511 = vrot.lane.b32.xlu0 %v117, 88
  %v512 = vpop.permute.xlu0 %511
  %v513 = vsel %vm123, %v510, 0
  %v515 = vsel %vm123, %v512, 0
  %517 = vmatprep.subr.mxu0 0.0
  %518 = vmatpush1.xpose.msra.mxu0 0.0
  %519 = vmatprep.subr.mxu0 0.0
  %520 = vmatpush1.xpose.msra.mxu0 0.0
  %521 = vmatprep.subr.mxu0 0.0
  %522 = vmatpush1.xpose.msra.mxu0 0.0
  %523 = vmatprep.subr.mxu0 0.0
  %524 = vmatpush1.xpose.msra.mxu0 0.0
  %525 = vmatprep.subr.mxu0 0.0
  %526 = vmatpush1.xpose.msra.mxu0 0.0
  %527 = vmatprep.subr.mxu0 0.0
  %528 = vmatpush1.xpose.msra.mxu0 0.0
  %529 = vmatprep.subr.mxu0 0.0
  %530 = vmatpush1.xpose.msra.mxu0 0.0
  %531 = vmatprep.subr.mxu0 0.0
  %532 = vmatpush1.xpose.msra.mxu0 0.0
  %533 = vmatprep.subr.mxu0 0.0
  %534 = vmatpush1.xpose.msra.mxu0 0.0
  %535 = vmatprep.subr.mxu0 0.0
  %536 = vmatpush1.xpose.msra.mxu0 0.0
  %537 = vmatprep.subr.mxu0 0.0
  %538 = vmatpush1.xpose.msra.mxu0 0.0
  %539 = vmatprep.subr.mxu0 0.0
  %540 = vmatpush1.xpose.msra.mxu0 0.0
  %541 = vmatprep.subr.mxu0 0.0
  %542 = vmatpush1.xpose.msra.mxu0 0.0
  %543 = vmatprep.subr.mxu0 0.0
  %544 = vmatpush1.xpose.msra.mxu0 0.0
  %545 = vmatprep.subr.mxu0 0.0
  %546 = vmatpush1.xpose.msra.mxu0 0.0
  %547 = vmatprep.subr.mxu0 0.0
  %548 = vmatpush1.xpose.msra.mxu0 %v515
  %549 = vmatprep.subr.mxu0 0.0
  %550 = vmatpush2.xpose.msra.mxu0 0.0
  %551 = vmatprep.subr.mxu0 0.0
  %552 = vmatpush2.xpose.msra.mxu0 0.0
  %553 = vmatprep.subr.mxu0 0.0
  %554 = vmatpush2.xpose.msra.mxu0 0.0
  %555 = vmatprep.subr.mxu0 0.0
  %556 = vmatpush2.xpose.msra.mxu0 0.0
  %557 = vmatprep.subr.mxu0 0.0
  %558 = vmatpush2.xpose.msra.mxu0 0.0
  %559 = vmatprep.subr.mxu0 0.0
  %560 = vmatpush2.xpose.msra.mxu0 0.0
  %561 = vmatprep.subr.mxu0 0.0
  %562 = vmatpush2.xpose.msra.mxu0 0.0
  %563 = vmatprep.subr.mxu0 0.0
  %564 = vmatpush2.xpose.msra.mxu0 0.0
  %565 = vmatprep.subr.mxu0 0.0
  %566 = vmatpush2.xpose.msra.mxu0 0.0
  %567 = vmatprep.subr.mxu0 0.0
  %568 = vmatpush2.xpose.msra.mxu0 0.0
  %569 = vmatprep.subr.mxu0 0.0
  %570 = vmatpush2.xpose.msra.mxu0 0.0
  %571 = vmatprep.subr.mxu0 0.0
  %572 = vmatpush2.xpose.msra.mxu0 0.0
  %573 = vmatprep.subr.mxu0 0.0
  %574 = vmatpush2.xpose.msra.mxu0 0.0
  %575 = vmatprep.subr.mxu0 0.0
  %576 = vmatpush2.xpose.msra.mxu0 0.0
  %577 = vmatprep.subr.mxu0 0.0
  %578 = vmatpush2.xpose.msra.mxu0 0.0
  %579 = vmatprep.subr.mxu0 0.0
  %580 = vmatpush2.xpose.msra.mxu0 0.0
  %581 = vmatprep.mubr.f32.mxu0 0.0
  %582 = vmatmul.mubr.f32.gmra.mxu0 %v513
  %v583 = vpop.f32.mrf.mxu0
  %v584 = vadd.f32 0.0, %v583
  %v585 = vpop.f32.mrf.mxu0
  %586 = vdwg.mxu0
  %587 = vrot.lane.b32.xlu0 %v117, 112
  %v588 = vpop.permute.xlu0 %587
  %589 = vrot.lane.b32.xlu0 %v117, 80
  %v590 = vpop.permute.xlu0 %589
  %v591 = vsel %vm123, %v588, 0
  %v593 = vsel %vm123, %v590, 0
  %595 = vmatprep.subr.mxu0 0.0
  %596 = vmatpush1.xpose.msra.mxu0 0.0
  %597 = vmatprep.subr.mxu0 0.0
  %598 = vmatpush1.xpose.msra.mxu0 0.0
  %599 = vmatprep.subr.mxu0 0.0
  %600 = vmatpush1.xpose.msra.mxu0 0.0
  %601 = vmatprep.subr.mxu0 0.0
  %602 = vmatpush1.xpose.msra.mxu0 0.0
  %603 = vmatprep.subr.mxu0 0.0
  %604 = vmatpush1.xpose.msra.mxu0 0.0
  %605 = vmatprep.subr.mxu0 0.0
  %606 = vmatpush1.xpose.msra.mxu0 0.0
  %607 = vmatprep.subr.mxu0 0.0
  %608 = vmatpush1.xpose.msra.mxu0 0.0
  %609 = vmatprep.subr.mxu0 0.0
  %610 = vmatpush1.xpose.msra.mxu0 0.0
  %611 = vmatprep.subr.mxu0 0.0
  %612 = vmatpush1.xpose.msra.mxu0 0.0
  %613 = vmatprep.subr.mxu0 0.0
  %614 = vmatpush1.xpose.msra.mxu0 0.0
  %615 = vmatprep.subr.mxu0 0.0
  %616 = vmatpush1.xpose.msra.mxu0 0.0
  %617 = vmatprep.subr.mxu0 0.0
  %618 = vmatpush1.xpose.msra.mxu0 0.0
  %619 = vmatprep.subr.mxu0 0.0
  %620 = vmatpush1.xpose.msra.mxu0 0.0
  %621 = vmatprep.subr.mxu0 0.0
  %622 = vmatpush1.xpose.msra.mxu0 0.0
  %623 = vmatprep.subr.mxu0 0.0
  %624 = vmatpush1.xpose.msra.mxu0 0.0
  %625 = vmatprep.subr.mxu0 0.0
  %626 = vmatpush1.xpose.msra.mxu0 %v593
  %627 = vmatprep.subr.mxu0 0.0
  %628 = vmatpush2.xpose.msra.mxu0 0.0
  %629 = vmatprep.subr.mxu0 0.0
  %630 = vmatpush2.xpose.msra.mxu0 0.0
  %631 = vmatprep.subr.mxu0 0.0
  %632 = vmatpush2.xpose.msra.mxu0 0.0
  %633 = vmatprep.subr.mxu0 0.0
  %634 = vmatpush2.xpose.msra.mxu0 0.0
  %635 = vmatprep.subr.mxu0 0.0
  %636 = vmatpush2.xpose.msra.mxu0 0.0
  %637 = vmatprep.subr.mxu0 0.0
  %638 = vmatpush2.xpose.msra.mxu0 0.0
  %639 = vmatprep.subr.mxu0 0.0
  %640 = vmatpush2.xpose.msra.mxu0 0.0
  %641 = vmatprep.subr.mxu0 0.0
  %642 = vmatpush2.xpose.msra.mxu0 0.0
  %643 = vmatprep.subr.mxu0 0.0
  %644 = vmatpush2.xpose.msra.mxu0 0.0
  %645 = vmatprep.subr.mxu0 0.0
  %646 = vmatpush2.xpose.msra.mxu0 0.0
  %647 = vmatprep.subr.mxu0 0.0
  %648 = vmatpush2.xpose.msra.mxu0 0.0
  %649 = vmatprep.subr.mxu0 0.0
  %650 = vmatpush2.xpose.msra.mxu0 0.0
  %651 = vmatprep.subr.mxu0 0.0
  %652 = vmatpush2.xpose.msra.mxu0 0.0
  %653 = vmatprep.subr.mxu0 0.0
  %654 = vmatpush2.xpose.msra.mxu0 0.0
  %655 = vmatprep.subr.mxu0 0.0
  %656 = vmatpush2.xpose.msra.mxu0 0.0
  %657 = vmatprep.subr.mxu0 0.0
  %658 = vmatpush2.xpose.msra.mxu0 0.0
  %659 = vmatprep.mubr.f32.mxu0 0.0
  %660 = vmatmul.mubr.f32.gmra.mxu0 %v591
  %v661 = vpop.f32.mrf.mxu0
  %v662 = vadd.f32 0.0, %v661
  %v663 = vpop.f32.mrf.mxu0
  %664 = vdwg.mxu0
  %665 = vrot.lane.b32.xlu0 %v117, 104
  %v666 = vpop.permute.xlu0 %665
  %667 = vrot.lane.b32.xlu0 %v117, 72
  %v668 = vpop.permute.xlu0 %667
  %v669 = vsel %vm123, %v666, 0
  %v671 = vsel %vm123, %v668, 0
  %673 = vmatprep.subr.mxu0 0.0
  %674 = vmatpush1.xpose.msra.mxu0 0.0
  %675 = vmatprep.subr.mxu0 0.0
  %676 = vmatpush1.xpose.msra.mxu0 0.0
  %677 = vmatprep.subr.mxu0 0.0
  %678 = vmatpush1.xpose.msra.mxu0 0.0
  %679 = vmatprep.subr.mxu0 0.0
  %680 = vmatpush1.xpose.msra.mxu0 0.0
  %681 = vmatprep.subr.mxu0 0.0
  %682 = vmatpush1.xpose.msra.mxu0 0.0
  %683 = vmatprep.subr.mxu0 0.0
  %684 = vmatpush1.xpose.msra.mxu0 0.0
  %685 = vmatprep.subr.mxu0 0.0
  %686 = vmatpush1.xpose.msra.mxu0 0.0
  %687 = vmatprep.subr.mxu0 0.0
  %688 = vmatpush1.xpose.msra.mxu0 0.0
  %689 = vmatprep.subr.mxu0 0.0
  %690 = vmatpush1.xpose.msra.mxu0 0.0
  %691 = vmatprep.subr.mxu0 0.0
  %692 = vmatpush1.xpose.msra.mxu0 0.0
  %693 = vmatprep.subr.mxu0 0.0
  %694 = vmatpush1.xpose.msra.mxu0 0.0
  %695 = vmatprep.subr.mxu0 0.0
  %696 = vmatpush1.xpose.msra.mxu0 0.0
  %697 = vmatprep.subr.mxu0 0.0
  %698 = vmatpush1.xpose.msra.mxu0 0.0
  %699 = vmatprep.subr.mxu0 0.0
  %700 = vmatpush1.xpose.msra.mxu0 0.0
  %701 = vmatprep.subr.mxu0 0.0
  %702 = vmatpush1.xpose.msra.mxu0 0.0
  %703 = vmatprep.subr.mxu0 0.0
  %704 = vmatpush1.xpose.msra.mxu0 %v671
  %705 = vmatprep.subr.mxu0 0.0
  %706 = vmatpush2.xpose.msra.mxu0 0.0
  %707 = vmatprep.subr.mxu0 0.0
  %708 = vmatpush2.xpose.msra.mxu0 0.0
  %709 = vmatprep.subr.mxu0 0.0
  %710 = vmatpush2.xpose.msra.mxu0 0.0
  %711 = vmatprep.subr.mxu0 0.0
  %712 = vmatpush2.xpose.msra.mxu0 0.0
  %713 = vmatprep.subr.mxu0 0.0
  %714 = vmatpush2.xpose.msra.mxu0 0.0
  %715 = vmatprep.subr.mxu0 0.0
  %716 = vmatpush2.xpose.msra.mxu0 0.0
  %717 = vmatprep.subr.mxu0 0.0
  %718 = vmatpush2.xpose.msra.mxu0 0.0
  %719 = vmatprep.subr.mxu0 0.0
  %720 = vmatpush2.xpose.msra.mxu0 0.0
  %721 = vmatprep.subr.mxu0 0.0
  %722 = vmatpush2.xpose.msra.mxu0 0.0
  %723 = vmatprep.subr.mxu0 0.0
  %724 = vmatpush2.xpose.msra.mxu0 0.0
  %725 = vmatprep.subr.mxu0 0.0
  %726 = vmatpush2.xpose.msra.mxu0 0.0
  %727 = vmatprep.subr.mxu0 0.0
  %728 = vmatpush2.xpose.msra.mxu0 0.0
  %729 = vmatprep.subr.mxu0 0.0
  %730 = vmatpush2.xpose.msra.mxu0 0.0
  %731 = vmatprep.subr.mxu0 0.0
  %732 = vmatpush2.xpose.msra.mxu0 0.0
  %733 = vmatprep.subr.mxu0 0.0
  %734 = vmatpush2.xpose.msra.mxu0 0.0
  %735 = vmatprep.subr.mxu0 0.0
  %736 = vmatpush2.xpose.msra.mxu0 0.0
  %737 = vmatprep.mubr.f32.mxu0 0.0
  %738 = vmatmul.mubr.f32.gmra.mxu0 %v669
  %v739 = vpop.f32.mrf.mxu0
  %v740 = vadd.f32 0.0, %v739
  %v741 = vpop.f32.mrf.mxu0
  %742 = vdwg.mxu0
  %v743 = vadd.f32 %v195, %v19
  %v744 = vadd.f32 %v273, %v20
  %v745 = vadd.f32 %v351, %v21
  %v746 = vadd.f32 %v429, %v22
  %v747 = vadd.f32 %v506, %v23
  %v748 = vadd.f32 %v584, %v24
  %v749 = vadd.f32 %v662, %v25
  %v750 = vadd.f32 %v740, %v26
  %v751 = vsel %vm123, %v743, -inf
  %752 = vmax.xlane.f32.xlu0 %v751
  %v753 = vpop.xlane.xlu0 %752
  %v754 = vsel %vm123, %v744, -inf
  %755 = vmax.xlane.f32.xlu0 %v754
  %v756 = vpop.xlane.xlu0 %755
  %v757 = vsel %vm123, %v745, -inf
  %758 = vmax.xlane.f32.xlu0 %v757
  %v759 = vpop.xlane.xlu0 %758
  %v760 = vsel %vm123, %v746, -inf
  %761 = vmax.xlane.f32.xlu0 %v760
  %v762 = vpop.xlane.xlu0 %761
  %v763 = vsel %vm123, %v747, -inf
  %764 = vmax.xlane.f32.xlu0 %v763
  %v765 = vpop.xlane.xlu0 %764
  %v766 = vsel %vm123, %v748, -inf
  %767 = vmax.xlane.f32.xlu0 %v766
  %v768 = vpop.xlane.xlu0 %767
  %v769 = vsel %vm123, %v749, -inf
  %770 = vmax.xlane.f32.xlu0 %v769
  %v771 = vpop.xlane.xlu0 %770
  %v772 = vsel %vm123, %v750, -inf
  %773 = vmax.xlane.f32.xlu0 %v772
  %v774 = vpop.xlane.xlu0 %773
  %v775 = vsub.f32 %v743, %v753
  %v776 = vsub.f32 %v744, %v756
  %v777 = vsub.f32 %v745, %v759
  %v778 = vsub.f32 %v746, %v762
  %v779 = vsub.f32 %v747, %v765
  %v780 = vsub.f32 %v748, %v768
  %v781 = vsub.f32 %v749, %v771
  %v782 = vsub.f32 %v750, %v774
  %v783 = vmul.f32 %v775, 1.442695
  %v784 = vpow.pop %v783
  %v785 = vmul.f32 %v776, 1.442695
  %v786 = vpow.pop %v785
  %v787 = vmul.f32 %v777, 1.442695
  %v788 = vpow.pop %v787
  %v789 = vmul.f32 %v778, 1.442695
  %v790 = vpow.pop %v789
  %v791 = vmul.f32 %v779, 1.442695
  %v792 = vpow.pop %v791
  %v793 = vmul.f32 %v780, 1.442695
  %v794 = vpow.pop %v793
  %v795 = vmul.f32 %v781, 1.442695
  %v796 = vpow.pop %v795
  %v797 = vmul.f32 %v782, 1.442695
  %v798 = vpow.pop %v797
  %v799 = vsel %vm123, %v784, 0.0
  %800 = vadd.xlane.f32.xlu0 %v799
  %v801 = vpop.xlane.xlu0 %800
  %v802 = vsel %vm123, %v786, 0.0
  %803 = vadd.xlane.f32.xlu0 %v802
  %v804 = vpop.xlane.xlu0 %803
  %v805 = vsel %vm123, %v788, 0.0
  %806 = vadd.xlane.f32.xlu0 %v805
  %v807 = vpop.xlane.xlu0 %806
  %v808 = vsel %vm123, %v790, 0.0
  %809 = vadd.xlane.f32.xlu0 %v808
  %v810 = vpop.xlane.xlu0 %809
  %v811 = vsel %vm123, %v792, 0.0
  %812 = vadd.xlane.f32.xlu0 %v811
  %v813 = vpop.xlane.xlu0 %812
  %v814 = vsel %vm123, %v794, 0.0
  %815 = vadd.xlane.f32.xlu0 %v814
  %v816 = vpop.xlane.xlu0 %815
  %v817 = vsel %vm123, %v796, 0.0
  %818 = vadd.xlane.f32.xlu0 %v817
  %v819 = vpop.xlane.xlu0 %818
  %v820 = vsel %vm123, %v798, 0.0
  %821 = vadd.xlane.f32.xlu0 %v820
  %v822 = vpop.xlane.xlu0 %821
  %v823 = vrcp.pop %v801
  %v824 = vrcp.pop %v804
  %v825 = vrcp.pop %v807
  %v826 = vrcp.pop %v810
  %v827 = vrcp.pop %v813
  %v828 = vrcp.pop %v816
  %v829 = vrcp.pop %v819
  %v830 = vrcp.pop %v822
  %v831 = vmul.f32 %v784, %v823
  %v832 = vmul.f32 %v786, %v824
  %v833 = vmul.f32 %v788, %v825
  %v834 = vmul.f32 %v790, %v826
  %v835 = vmul.f32 %v792, %v827
  %v836 = vmul.f32 %v794, %v828
  %v837 = vmul.f32 %v796, %v829
  %v838 = vmul.f32 %v798, %v830
  %839 = vrot.lane.b32.xlu0 %v112, 64
  %v840 = vpop.permute.xlu0 %839
  %v843 = vsel %vm123, %v831, 0
  %845 = vmatprep.subr.mxu0 0.0
  %846 = vmatpush1.msra.mxu0 0.0
  %847 = vmatprep.subr.mxu0 0.0
  %848 = vmatpush1.msra.mxu0 0.0
  %849 = vmatprep.subr.mxu0 0.0
  %850 = vmatpush1.msra.mxu0 0.0
  %851 = vmatprep.subr.mxu0 0.0
  %852 = vmatpush1.msra.mxu0 0.0
  %853 = vmatprep.subr.mxu0 0.0
  %854 = vmatpush1.msra.mxu0 0.0
  %855 = vmatprep.subr.mxu0 0.0
  %856 = vmatpush1.msra.mxu0 0.0
  %857 = vmatprep.subr.mxu0 0.0
  %858 = vmatpush1.msra.mxu0 0.0
  %859 = vmatprep.subr.mxu0 0.0
  %860 = vmatpush1.msra.mxu0 0.0
  %861 = vmatprep.subr.mxu0 0.0
  %862 = vmatpush1.msra.mxu0 0.0
  %863 = vmatprep.subr.mxu0 0.0
  %864 = vmatpush1.msra.mxu0 0.0
  %865 = vmatprep.subr.mxu0 0.0
  %866 = vmatpush1.msra.mxu0 0.0
  %867 = vmatprep.subr.mxu0 0.0
  %868 = vmatpush1.msra.mxu0 0.0
  %869 = vmatprep.subr.mxu0 0.0
  %870 = vmatpush1.msra.mxu0 0.0
  %871 = vmatprep.subr.mxu0 0.0
  %872 = vmatpush1.msra.mxu0 0.0
  %873 = vmatprep.subr.mxu0 0.0
  %874 = vmatpush1.msra.mxu0 0.0
  %875 = vmatprep.subr.mxu0 0.0
  %876 = vmatpush1.msra.mxu0 %v840
  %877 = vmatprep.subr.mxu0 0.0
  %878 = vmatpush2.msra.mxu0 0.0
  %879 = vmatprep.subr.mxu0 0.0
  %880 = vmatpush2.msra.mxu0 0.0
  %881 = vmatprep.subr.mxu0 0.0
  %882 = vmatpush2.msra.mxu0 0.0
  %883 = vmatprep.subr.mxu0 0.0
  %884 = vmatpush2.msra.mxu0 0.0
  %885 = vmatprep.subr.mxu0 0.0
  %886 = vmatpush2.msra.mxu0 0.0
  %887 = vmatprep.subr.mxu0 0.0
  %888 = vmatpush2.msra.mxu0 0.0
  %889 = vmatprep.subr.mxu0 0.0
  %890 = vmatpush2.msra.mxu0 0.0
  %891 = vmatprep.subr.mxu0 0.0
  %892 = vmatpush2.msra.mxu0 0.0
  %893 = vmatprep.subr.mxu0 0.0
  %894 = vmatpush2.msra.mxu0 0.0
  %895 = vmatprep.subr.mxu0 0.0
  %896 = vmatpush2.msra.mxu0 0.0
  %897 = vmatprep.subr.mxu0 0.0
  %898 = vmatpush2.msra.mxu0 0.0
  %899 = vmatprep.subr.mxu0 0.0
  %900 = vmatpush2.msra.mxu0 0.0
  %901 = vmatprep.subr.mxu0 0.0
  %902 = vmatpush2.msra.mxu0 0.0
  %903 = vmatprep.subr.mxu0 0.0
  %904 = vmatpush2.msra.mxu0 0.0
  %905 = vmatprep.subr.mxu0 0.0
  %906 = vmatpush2.msra.mxu0 0.0
  %907 = vmatprep.subr.mxu0 0.0
  %908 = vmatpush2.msra.mxu0 0.0
  %909 = vmatprep.mubr.f32.mxu0 0.0
  %910 = vmatmul.mubr.f32.gmra.mxu0 %v843
  %v911 = vpop.f32.mrf.mxu0
  %v912 = vadd.f32 0.0, %v911
  %v913 = vpop.f32.mrf.mxu0
  %914 = vdwg.mxu0
  %915 = vrot.lane.b32.xlu0 %v112, 56
  %v916 = vpop.permute.xlu0 %915
  %v919 = vsel %vm123, %v832, 0
  %921 = vmatprep.subr.mxu0 0.0
  %922 = vmatpush1.msra.mxu0 0.0
  %923 = vmatprep.subr.mxu0 0.0
  %924 = vmatpush1.msra.mxu0 0.0
  %925 = vmatprep.subr.mxu0 0.0
  %926 = vmatpush1.msra.mxu0 0.0
  %927 = vmatprep.subr.mxu0 0.0
  %928 = vmatpush1.msra.mxu0 0.0
  %929 = vmatprep.subr.mxu0 0.0
  %930 = vmatpush1.msra.mxu0 0.0
  %931 = vmatprep.subr.mxu0 0.0
  %932 = vmatpush1.msra.mxu0 0.0
  %933 = vmatprep.subr.mxu0 0.0
  %934 = vmatpush1.msra.mxu0 0.0
  %935 = vmatprep.subr.mxu0 0.0
  %936 = vmatpush1.msra.mxu0 0.0
  %937 = vmatprep.subr.mxu0 0.0
  %938 = vmatpush1.msra.mxu0 0.0
  %939 = vmatprep.subr.mxu0 0.0
  %940 = vmatpush1.msra.mxu0 0.0
  %941 = vmatprep.subr.mxu0 0.0
  %942 = vmatpush1.msra.mxu0 0.0
  %943 = vmatprep.subr.mxu0 0.0
  %944 = vmatpush1.msra.mxu0 0.0
  %945 = vmatprep.subr.mxu0 0.0
  %946 = vmatpush1.msra.mxu0 0.0
  %947 = vmatprep.subr.mxu0 0.0
  %948 = vmatpush1.msra.mxu0 0.0
  %949 = vmatprep.subr.mxu0 0.0
  %950 = vmatpush1.msra.mxu0 0.0
  %951 = vmatprep.subr.mxu0 0.0
  %952 = vmatpush1.msra.mxu0 %v916
  %953 = vmatprep.subr.mxu0 0.0
  %954 = vmatpush2.msra.mxu0 0.0
  %955 = vmatprep.subr.mxu0 0.0
  %956 = vmatpush2.msra.mxu0 0.0
  %957 = vmatprep.subr.mxu0 0.0
  %958 = vmatpush2.msra.mxu0 0.0
  %959 = vmatprep.subr.mxu0 0.0
  %960 = vmatpush2.msra.mxu0 0.0
  %961 = vmatprep.subr.mxu0 0.0
  %962 = vmatpush2.msra.mxu0 0.0
  %963 = vmatprep.subr.mxu0 0.0
  %964 = vmatpush2.msra.mxu0 0.0
  %965 = vmatprep.subr.mxu0 0.0
  %966 = vmatpush2.msra.mxu0 0.0
  %967 = vmatprep.subr.mxu0 0.0
  %968 = vmatpush2.msra.mxu0 0.0
  %969 = vmatprep.subr.mxu0 0.0
  %970 = vmatpush2.msra.mxu0 0.0
  %971 = vmatprep.subr.mxu0 0.0
  %972 = vmatpush2.msra.mxu0 0.0
  %973 = vmatprep.subr.mxu0 0.0
  %974 = vmatpush2.msra.mxu0 0.0
  %975 = vmatprep.subr.mxu0 0.0
  %976 = vmatpush2.msra.mxu0 0.0
  %977 = vmatprep.subr.mxu0 0.0
  %978 = vmatpush2.msra.mxu0 0.0
  %979 = vmatprep.subr.mxu0 0.0
  %980 = vmatpush2.msra.mxu0 0.0
  %981 = vmatprep.subr.mxu0 0.0
  %982 = vmatpush2.msra.mxu0 0.0
  %983 = vmatprep.subr.mxu0 0.0
  %984 = vmatpush2.msra.mxu0 0.0
  %985 = vmatprep.mubr.f32.mxu0 0.0
  %986 = vmatmul.mubr.f32.gmra.mxu0 %v919
  %v987 = vpop.f32.mrf.mxu0
  %v988 = vadd.f32 0.0, %v987
  %v989 = vpop.f32.mrf.mxu0
  %990 = vdwg.mxu0
  %991 = vrot.lane.b32.xlu0 %v112, 48
  %v992 = vpop.permute.xlu0 %991
  %v995 = vsel %vm123, %v833, 0
  %997 = vmatprep.subr.mxu0 0.0
  %998 = vmatpush1.msra.mxu0 0.0
  %999 = vmatprep.subr.mxu0 0.0
  %1000 = vmatpush1.msra.mxu0 0.0
  %1001 = vmatprep.subr.mxu0 0.0
  %1002 = vmatpush1.msra.mxu0 0.0
  %1003 = vmatprep.subr.mxu0 0.0
  %1004 = vmatpush1.msra.mxu0 0.0
  %1005 = vmatprep.subr.mxu0 0.0
  %1006 = vmatpush1.msra.mxu0 0.0
  %1007 = vmatprep.subr.mxu0 0.0
  %1008 = vmatpush1.msra.mxu0 0.0
  %1009 = vmatprep.subr.mxu0 0.0
  %1010 = vmatpush1.msra.mxu0 0.0
  %1011 = vmatprep.subr.mxu0 0.0
  %1012 = vmatpush1.msra.mxu0 0.0
  %1013 = vmatprep.subr.mxu0 0.0
  %1014 = vmatpush1.msra.mxu0 0.0
  %1015 = vmatprep.subr.mxu0 0.0
  %1016 = vmatpush1.msra.mxu0 0.0
  %1017 = vmatprep.subr.mxu0 0.0
  %1018 = vmatpush1.msra.mxu0 0.0
  %1019 = vmatprep.subr.mxu0 0.0
  %1020 = vmatpush1.msra.mxu0 0.0
  %1021 = vmatprep.subr.mxu0 0.0
  %1022 = vmatpush1.msra.mxu0 0.0
  %1023 = vmatprep.subr.mxu0 0.0
  %1024 = vmatpush1.msra.mxu0 0.0
  %1025 = vmatprep.subr.mxu0 0.0
  %1026 = vmatpush1.msra.mxu0 0.0
  %1027 = vmatprep.subr.mxu0 0.0
  %1028 = vmatpush1.msra.mxu0 %v992
  %1029 = vmatprep.subr.mxu0 0.0
  %1030 = vmatpush2.msra.mxu0 0.0
  %1031 = vmatprep.subr.mxu0 0.0
  %1032 = vmatpush2.msra.mxu0 0.0
  %1033 = vmatprep.subr.mxu0 0.0
  %1034 = vmatpush2.msra.mxu0 0.0
  %1035 = vmatprep.subr.mxu0 0.0
  %1036 = vmatpush2.msra.mxu0 0.0
  %1037 = vmatprep.subr.mxu0 0.0
  %1038 = vmatpush2.msra.mxu0 0.0
  %1039 = vmatprep.subr.mxu0 0.0
  %1040 = vmatpush2.msra.mxu0 0.0
  %1041 = vmatprep.subr.mxu0 0.0
  %1042 = vmatpush2.msra.mxu0 0.0
  %1043 = vmatprep.subr.mxu0 0.0
  %1044 = vmatpush2.msra.mxu0 0.0
  %1045 = vmatprep.subr.mxu0 0.0
  %1046 = vmatpush2.msra.mxu0 0.0
  %1047 = vmatprep.subr.mxu0 0.0
  %1048 = vmatpush2.msra.mxu0 0.0
  %1049 = vmatprep.subr.mxu0 0.0
  %1050 = vmatpush2.msra.mxu0 0.0
  %1051 = vmatprep.subr.mxu0 0.0
  %1052 = vmatpush2.msra.mxu0 0.0
  %1053 = vmatprep.subr.mxu0 0.0
  %1054 = vmatpush2.msra.mxu0 0.0
  %1055 = vmatprep.subr.mxu0 0.0
  %1056 = vmatpush2.msra.mxu0 0.0
  %1057 = vmatprep.subr.mxu0 0.0
  %1058 = vmatpush2.msra.mxu0 0.0
  %1059 = vmatprep.subr.mxu0 0.0
  %1060 = vmatpush2.msra.mxu0 0.0
  %1061 = vmatprep.mubr.f32.mxu0 0.0
  %1062 = vmatmul.mubr.f32.gmra.mxu0 %v995
  %v1063 = vpop.f32.mrf.mxu0
  %v1064 = vadd.f32 0.0, %v1063
  %v1065 = vpop.f32.mrf.mxu0
  %1066 = vdwg.mxu0
  %1067 = vrot.lane.b32.xlu0 %v112, 40
  %v1068 = vpop.permute.xlu0 %1067
  %v1071 = vsel %vm123, %v834, 0
  %1073 = vmatprep.subr.mxu0 0.0
  %1074 = vmatpush1.msra.mxu0 0.0
  %1075 = vmatprep.subr.mxu0 0.0
  %1076 = vmatpush1.msra.mxu0 0.0
  %1077 = vmatprep.subr.mxu0 0.0
  %1078 = vmatpush1.msra.mxu0 0.0
  %1079 = vmatprep.subr.mxu0 0.0
  %1080 = vmatpush1.msra.mxu0 0.0
  %1081 = vmatprep.subr.mxu0 0.0
  %1082 = vmatpush1.msra.mxu0 0.0
  %1083 = vmatprep.subr.mxu0 0.0
  %1084 = vmatpush1.msra.mxu0 0.0
  %1085 = vmatprep.subr.mxu0 0.0
  %1086 = vmatpush1.msra.mxu0 0.0
  %1087 = vmatprep.subr.mxu0 0.0
  %1088 = vmatpush1.msra.mxu0 0.0
  %1089 = vmatprep.subr.mxu0 0.0
  %1090 = vmatpush1.msra.mxu0 0.0
  %1091 = vmatprep.subr.mxu0 0.0
  %1092 = vmatpush1.msra.mxu0 0.0
  %1093 = vmatprep.subr.mxu0 0.0
  %1094 = vmatpush1.msra.mxu0 0.0
  %1095 = vmatprep.subr.mxu0 0.0
  %1096 = vmatpush1.msra.mxu0 0.0
  %1097 = vmatprep.subr.mxu0 0.0
  %1098 = vmatpush1.msra.mxu0 0.0
  %1099 = vmatprep.subr.mxu0 0.0
  %1100 = vmatpush1.msra.mxu0 0.0
  %1101 = vmatprep.subr.mxu0 0.0
  %1102 = vmatpush1.msra.mxu0 0.0
  %1103 = vmatprep.subr.mxu0 0.0
  %1104 = vmatpush1.msra.mxu0 %v1068
  %1105 = vmatprep.subr.mxu0 0.0
  %1106 = vmatpush2.msra.mxu0 0.0
  %1107 = vmatprep.subr.mxu0 0.0
  %1108 = vmatpush2.msra.mxu0 0.0
  %1109 = vmatprep.subr.mxu0 0.0
  %1110 = vmatpush2.msra.mxu0 0.0
  %1111 = vmatprep.subr.mxu0 0.0
  %1112 = vmatpush2.msra.mxu0 0.0
  %1113 = vmatprep.subr.mxu0 0.0
  %1114 = vmatpush2.msra.mxu0 0.0
  %1115 = vmatprep.subr.mxu0 0.0
  %1116 = vmatpush2.msra.mxu0 0.0
  %1117 = vmatprep.subr.mxu0 0.0
  %1118 = vmatpush2.msra.mxu0 0.0
  %1119 = vmatprep.subr.mxu0 0.0
  %1120 = vmatpush2.msra.mxu0 0.0
  %1121 = vmatprep.subr.mxu0 0.0
  %1122 = vmatpush2.msra.mxu0 0.0
  %1123 = vmatprep.subr.mxu0 0.0
  %1124 = vmatpush2.msra.mxu0 0.0
  %1125 = vmatprep.subr.mxu0 0.0
  %1126 = vmatpush2.msra.mxu0 0.0
  %1127 = vmatprep.subr.mxu0 0.0
  %1128 = vmatpush2.msra.mxu0 0.0
  %1129 = vmatprep.subr.mxu0 0.0
  %1130 = vmatpush2.msra.mxu0 0.0
  %1131 = vmatprep.subr.mxu0 0.0
  %1132 = vmatpush2.msra.mxu0 0.0
  %1133 = vmatprep.subr.mxu0 0.0
  %1134 = vmatpush2.msra.mxu0 0.0
  %1135 = vmatprep.subr.mxu0 0.0
  %1136 = vmatpush2.msra.mxu0 0.0
  %1137 = vmatprep.mubr.f32.mxu0 0.0
  %1138 = vmatmul.mubr.f32.gmra.mxu0 %v1071
  %v1139 = vpop.f32.mrf.mxu0
  %v1140 = vadd.f32 0.0, %v1139
  %v1141 = vpop.f32.mrf.mxu0
  %1142 = vdwg.mxu0
  %1144 = vrot.lane.b32.xlu0 %v988, 8
  %v1145 = vpop.permute.xlu0 %1144
  %1148 = vrot.lane.b32.xlu0 %v1064, 16
  %v1149 = vpop.permute.xlu0 %1148
  %1152 = vrot.lane.b32.xlu0 %v1140, 24
  %v1153 = vpop.permute.xlu0 %1152
  %v1155 = vsel %vm123, %v912, %v1145
  %vm1156 = vcmask 130048
  %v1157 = vsel %vm1156, %v1155, %v1149
  %vm1158 = vcmask 195584
  %v1159 = vsel %vm1158, %v1157, %v1153
  %1160 = vrot.lane.b32.xlu0 %v832, 8
  %v1161 = vpop.permute.xlu0 %1160
  %1163 = vrot.lane.b32.xlu0 %v833, 16
  %v1164 = vpop.permute.xlu0 %1163
  %1166 = vrot.lane.b32.xlu0 %v834, 24
  %v1167 = vpop.permute.xlu0 %1166
  %v1169 = vsel %vm123, %v831, %v1161
  %v1170 = vsel %vm1156, %v1169, %v1164
  %v1171 = vsel %vm1158, %v1170, %v1167
  %1172 = vrot.lane.b32.xlu0 %v117, 64
  %v1173 = vpop.permute.xlu0 %1172
  %v1176 = vsel %vm123, %v835, 0
  %1178 = vmatprep.subr.mxu0 0.0
  %1179 = vmatpush1.msra.mxu0 0.0
  %1180 = vmatprep.subr.mxu0 0.0
  %1181 = vmatpush1.msra.mxu0 0.0
  %1182 = vmatprep.subr.mxu0 0.0
  %1183 = vmatpush1.msra.mxu0 0.0
  %1184 = vmatprep.subr.mxu0 0.0
  %1185 = vmatpush1.msra.mxu0 0.0
  %1186 = vmatprep.subr.mxu0 0.0
  %1187 = vmatpush1.msra.mxu0 0.0
  %1188 = vmatprep.subr.mxu0 0.0
  %1189 = vmatpush1.msra.mxu0 0.0
  %1190 = vmatprep.subr.mxu0 0.0
  %1191 = vmatpush1.msra.mxu0 0.0
  %1192 = vmatprep.subr.mxu0 0.0
  %1193 = vmatpush1.msra.mxu0 0.0
  %1194 = vmatprep.subr.mxu0 0.0
  %1195 = vmatpush1.msra.mxu0 0.0
  %1196 = vmatprep.subr.mxu0 0.0
  %1197 = vmatpush1.msra.mxu0 0.0
  %1198 = vmatprep.subr.mxu0 0.0
  %1199 = vmatpush1.msra.mxu0 0.0
  %1200 = vmatprep.subr.mxu0 0.0
  %1201 = vmatpush1.msra.mxu0 0.0
  %1202 = vmatprep.subr.mxu0 0.0
  %1203 = vmatpush1.msra.mxu0 0.0
  %1204 = vmatprep.subr.mxu0 0.0
  %1205 = vmatpush1.msra.mxu0 0.0
  %1206 = vmatprep.subr.mxu0 0.0
  %1207 = vmatpush1.msra.mxu0 0.0
  %1208 = vmatprep.subr.mxu0 0.0
  %1209 = vmatpush1.msra.mxu0 %v1173
  %1210 = vmatprep.subr.mxu0 0.0
  %1211 = vmatpush2.msra.mxu0 0.0
  %1212 = vmatprep.subr.mxu0 0.0
  %1213 = vmatpush2.msra.mxu0 0.0
  %1214 = vmatprep.subr.mxu0 0.0
  %1215 = vmatpush2.msra.mxu0 0.0
  %1216 = vmatprep.subr.mxu0 0.0
  %1217 = vmatpush2.msra.mxu0 0.0
  %1218 = vmatprep.subr.mxu0 0.0
  %1219 = vmatpush2.msra.mxu0 0.0
  %1220 = vmatprep.subr.mxu0 0.0
  %1221 = vmatpush2.msra.mxu0 0.0
  %1222 = vmatprep.subr.mxu0 0.0
  %1223 = vmatpush2.msra.mxu0 0.0
  %1224 = vmatprep.subr.mxu0 0.0
  %1225 = vmatpush2.msra.mxu0 0.0
  %1226 = vmatprep.subr.mxu0 0.0
  %1227 = vmatpush2.msra.mxu0 0.0
  %1228 = vmatprep.subr.mxu0 0.0
  %1229 = vmatpush2.msra.mxu0 0.0
  %1230 = vmatprep.subr.mxu0 0.0
  %1231 = vmatpush2.msra.mxu0 0.0
  %1232 = vmatprep.subr.mxu0 0.0
  %1233 = vmatpush2.msra.mxu0 0.0
  %1234 = vmatprep.subr.mxu0 0.0
  %1235 = vmatpush2.msra.mxu0 0.0
  %1236 = vmatprep.subr.mxu0 0.0
  %1237 = vmatpush2.msra.mxu0 0.0
  %1238 = vmatprep.subr.mxu0 0.0
  %1239 = vmatpush2.msra.mxu0 0.0
  %1240 = vmatprep.subr.mxu0 0.0
  %1241 = vmatpush2.msra.mxu0 0.0
  %1242 = vmatprep.mubr.f32.mxu0 0.0
  %1243 = vmatmul.mubr.f32.gmra.mxu0 %v1176
  %v1244 = vpop.f32.mrf.mxu0
  %v1245 = vadd.f32 0.0, %v1244
  %v1246 = vpop.f32.mrf.mxu0
  %1247 = vdwg.mxu0
  %1248 = vrot.lane.b32.xlu0 %v117, 56
  %v1249 = vpop.permute.xlu0 %1248
  %v1252 = vsel %vm123, %v836, 0
  %1254 = vmatprep.subr.mxu0 0.0
  %1255 = vmatpush1.msra.mxu0 0.0
  %1256 = vmatprep.subr.mxu0 0.0
  %1257 = vmatpush1.msra.mxu0 0.0
  %1258 = vmatprep.subr.mxu0 0.0
  %1259 = vmatpush1.msra.mxu0 0.0
  %1260 = vmatprep.subr.mxu0 0.0
  %1261 = vmatpush1.msra.mxu0 0.0
  %1262 = vmatprep.subr.mxu0 0.0
  %1263 = vmatpush1.msra.mxu0 0.0
  %1264 = vmatprep.subr.mxu0 0.0
  %1265 = vmatpush1.msra.mxu0 0.0
  %1266 = vmatprep.subr.mxu0 0.0
  %1267 = vmatpush1.msra.mxu0 0.0
  %1268 = vmatprep.subr.mxu0 0.0
  %1269 = vmatpush1.msra.mxu0 0.0
  %1270 = vmatprep.subr.mxu0 0.0
  %1271 = vmatpush1.msra.mxu0 0.0
  %1272 = vmatprep.subr.mxu0 0.0
  %1273 = vmatpush1.msra.mxu0 0.0
  %1274 = vmatprep.subr.mxu0 0.0
  %1275 = vmatpush1.msra.mxu0 0.0
  %1276 = vmatprep.subr.mxu0 0.0
  %1277 = vmatpush1.msra.mxu0 0.0
  %1278 = vmatprep.subr.mxu0 0.0
  %1279 = vmatpush1.msra.mxu0 0.0
  %1280 = vmatprep.subr.mxu0 0.0
  %1281 = vmatpush1.msra.mxu0 0.0
  %1282 = vmatprep.subr.mxu0 0.0
  %1283 = vmatpush1.msra.mxu0 0.0
  %1284 = vmatprep.subr.mxu0 0.0
  %1285 = vmatpush1.msra.mxu0 %v1249
  %1286 = vmatprep.subr.mxu0 0.0
  %1287 = vmatpush2.msra.mxu0 0.0
  %1288 = vmatprep.subr.mxu0 0.0
  %1289 = vmatpush2.msra.mxu0 0.0
  %1290 = vmatprep.subr.mxu0 0.0
  %1291 = vmatpush2.msra.mxu0 0.0
  %1292 = vmatprep.subr.mxu0 0.0
  %1293 = vmatpush2.msra.mxu0 0.0
  %1294 = vmatprep.subr.mxu0 0.0
  %1295 = vmatpush2.msra.mxu0 0.0
  %1296 = vmatprep.subr.mxu0 0.0
  %1297 = vmatpush2.msra.mxu0 0.0
  %1298 = vmatprep.subr.mxu0 0.0
  %1299 = vmatpush2.msra.mxu0 0.0
  %1300 = vmatprep.subr.mxu0 0.0
  %1301 = vmatpush2.msra.mxu0 0.0
  %1302 = vmatprep.subr.mxu0 0.0
  %1303 = vmatpush2.msra.mxu0 0.0
  %1304 = vmatprep.subr.mxu0 0.0
  %1305 = vmatpush2.msra.mxu0 0.0
  %1306 = vmatprep.subr.mxu0 0.0
  %1307 = vmatpush2.msra.mxu0 0.0
  %1308 = vmatprep.subr.mxu0 0.0
  %1309 = vmatpush2.msra.mxu0 0.0
  %1310 = vmatprep.subr.mxu0 0.0
  %1311 = vmatpush2.msra.mxu0 0.0
  %1312 = vmatprep.subr.mxu0 0.0
  %1313 = vmatpush2.msra.mxu0 0.0
  %1314 = vmatprep.subr.mxu0 0.0
  %1315 = vmatpush2.msra.mxu0 0.0
  %1316 = vmatprep.subr.mxu0 0.0
  %1317 = vmatpush2.msra.mxu0 0.0
  %1318 = vmatprep.mubr.f32.mxu0 0.0
  %1319 = vmatmul.mubr.f32.gmra.mxu0 %v1252
  %v1320 = vpop.f32.mrf.mxu0
  %v1321 = vadd.f32 0.0, %v1320
  %v1322 = vpop.f32.mrf.mxu0
  %1323 = vdwg.mxu0
  %1324 = vrot.lane.b32.xlu0 %v117, 48
  %v1325 = vpop.permute.xlu0 %1324
  %v1328 = vsel %vm123, %v837, 0
  %1330 = vmatprep.subr.mxu0 0.0
  %1331 = vmatpush1.msra.mxu0 0.0
  %1332 = vmatprep.subr.mxu0 0.0
  %1333 = vmatpush1.msra.mxu0 0.0
  %1334 = vmatprep.subr.mxu0 0.0
  %1335 = vmatpush1.msra.mxu0 0.0
  %1336 = vmatprep.subr.mxu0 0.0
  %1337 = vmatpush1.msra.mxu0 0.0
  %1338 = vmatprep.subr.mxu0 0.0
  %1339 = vmatpush1.msra.mxu0 0.0
  %1340 = vmatprep.subr.mxu0 0.0
  %1341 = vmatpush1.msra.mxu0 0.0
  %1342 = vmatprep.subr.mxu0 0.0
  %1343 = vmatpush1.msra.mxu0 0.0
  %1344 = vmatprep.subr.mxu0 0.0
  %1345 = vmatpush1.msra.mxu0 0.0
  %1346 = vmatprep.subr.mxu0 0.0
  %1347 = vmatpush1.msra.mxu0 0.0
  %1348 = vmatprep.subr.mxu0 0.0
  %1349 = vmatpush1.msra.mxu0 0.0
  %1350 = vmatprep.subr.mxu0 0.0
  %1351 = vmatpush1.msra.mxu0 0.0
  %1352 = vmatprep.subr.mxu0 0.0
  %1353 = vmatpush1.msra.mxu0 0.0
  %1354 = vmatprep.subr.mxu0 0.0
  %1355 = vmatpush1.msra.mxu0 0.0
  %1356 = vmatprep.subr.mxu0 0.0
  %1357 = vmatpush1.msra.mxu0 0.0
  %1358 = vmatprep.subr.mxu0 0.0
  %1359 = vmatpush1.msra.mxu0 0.0
  %1360 = vmatprep.subr.mxu0 0.0
  %1361 = vmatpush1.msra.mxu0 %v1325
  %1362 = vmatprep.subr.mxu0 0.0
  %1363 = vmatpush2.msra.mxu0 0.0
  %1364 = vmatprep.subr.mxu0 0.0
  %1365 = vmatpush2.msra.mxu0 0.0
  %1366 = vmatprep.subr.mxu0 0.0
  %1367 = vmatpush2.msra.mxu0 0.0
  %1368 = vmatprep.subr.mxu0 0.0
  %1369 = vmatpush2.msra.mxu0 0.0
  %1370 = vmatprep.subr.mxu0 0.0
  %1371 = vmatpush2.msra.mxu0 0.0
  %1372 = vmatprep.subr.mxu0 0.0
  %1373 = vmatpush2.msra.mxu0 0.0
  %1374 = vmatprep.subr.mxu0 0.0
  %1375 = vmatpush2.msra.mxu0 0.0
  %1376 = vmatprep.subr.mxu0 0.0
  %1377 = vmatpush2.msra.mxu0 0.0
  %1378 = vmatprep.subr.mxu0 0.0
  %1379 = vmatpush2.msra.mxu0 0.0
  %1380 = vmatprep.subr.mxu0 0.0
  %1381 = vmatpush2.msra.mxu0 0.0
  %1382 = vmatprep.subr.mxu0 0.0
  %1383 = vmatpush2.msra.mxu0 0.0
  %1384 = vmatprep.subr.mxu0 0.0
  %1385 = vmatpush2.msra.mxu0 0.0
  %1386 = vmatprep.subr.mxu0 0.0
  %1387 = vmatpush2.msra.mxu0 0.0
  %1388 = vmatprep.subr.mxu0 0.0
  %1389 = vmatpush2.msra.mxu0 0.0
  %1390 = vmatprep.subr.mxu0 0.0
  %1391 = vmatpush2.msra.mxu0 0.0
  %1392 = vmatprep.subr.mxu0 0.0
  %1393 = vmatpush2.msra.mxu0 0.0
  %1394 = vmatprep.mubr.f32.mxu0 0.0
  %1395 = vmatmul.mubr.f32.gmra.mxu0 %v1328
  %v1396 = vpop.f32.mrf.mxu0
  %v1397 = vadd.f32 0.0, %v1396
  %v1398 = vpop.f32.mrf.mxu0
  %1399 = vdwg.mxu0
  %1400 = vrot.lane.b32.xlu0 %v117, 40
  %v1401 = vpop.permute.xlu0 %1400
  %v1404 = vsel %vm123, %v838, 0
  %1406 = vmatprep.subr.mxu0 0.0
  %1407 = vmatpush1.msra.mxu0 0.0
  %1408 = vmatprep.subr.mxu0 0.0
  %1409 = vmatpush1.msra.mxu0 0.0
  %1410 = vmatprep.subr.mxu0 0.0
  %1411 = vmatpush1.msra.mxu0 0.0
  %1412 = vmatprep.subr.mxu0 0.0
  %1413 = vmatpush1.msra.mxu0 0.0
  %1414 = vmatprep.subr.mxu0 0.0
  %1415 = vmatpush1.msra.mxu0 0.0
  %1416 = vmatprep.subr.mxu0 0.0
  %1417 = vmatpush1.msra.mxu0 0.0
  %1418 = vmatprep.subr.mxu0 0.0
  %1419 = vmatpush1.msra.mxu0 0.0
  %1420 = vmatprep.subr.mxu0 0.0
  %1421 = vmatpush1.msra.mxu0 0.0
  %1422 = vmatprep.subr.mxu0 0.0
  %1423 = vmatpush1.msra.mxu0 0.0
  %1424 = vmatprep.subr.mxu0 0.0
  %1425 = vmatpush1.msra.mxu0 0.0
  %1426 = vmatprep.subr.mxu0 0.0
  %1427 = vmatpush1.msra.mxu0 0.0
  %1428 = vmatprep.subr.mxu0 0.0
  %1429 = vmatpush1.msra.mxu0 0.0
  %1430 = vmatprep.subr.mxu0 0.0
  %1431 = vmatpush1.msra.mxu0 0.0
  %1432 = vmatprep.subr.mxu0 0.0
  %1433 = vmatpush1.msra.mxu0 0.0
  %1434 = vmatprep.subr.mxu0 0.0
  %1435 = vmatpush1.msra.mxu0 0.0
  %1436 = vmatprep.subr.mxu0 0.0
  %1437 = vmatpush1.msra.mxu0 %v1401
  %1438 = vmatprep.subr.mxu0 0.0
  %1439 = vmatpush2.msra.mxu0 0.0
  %1440 = vmatprep.subr.mxu0 0.0
  %1441 = vmatpush2.msra.mxu0 0.0
  %1442 = vmatprep.subr.mxu0 0.0
  %1443 = vmatpush2.msra.mxu0 0.0
  %1444 = vmatprep.subr.mxu0 0.0
  %1445 = vmatpush2.msra.mxu0 0.0
  %1446 = vmatprep.subr.mxu0 0.0
  %1447 = vmatpush2.msra.mxu0 0.0
  %1448 = vmatprep.subr.mxu0 0.0
  %1449 = vmatpush2.msra.mxu0 0.0
  %1450 = vmatprep.subr.mxu0 0.0
  %1451 = vmatpush2.msra.mxu0 0.0
  %1452 = vmatprep.subr.mxu0 0.0
  %1453 = vmatpush2.msra.mxu0 0.0
  %1454 = vmatprep.subr.mxu0 0.0
  %1455 = vmatpush2.msra.mxu0 0.0
  %1456 = vmatprep.subr.mxu0 0.0
  %1457 = vmatpush2.msra.mxu0 0.0
  %1458 = vmatprep.subr.mxu0 0.0
  %1459 = vmatpush2.msra.mxu0 0.0
  %1460 = vmatprep.subr.mxu0 0.0
  %1461 = vmatpush2.msra.mxu0 0.0
  %1462 = vmatprep.subr.mxu0 0.0
  %1463 = vmatpush2.msra.mxu0 0.0
  %1464 = vmatprep.subr.mxu0 0.0
  %1465 = vmatpush2.msra.mxu0 0.0
  %1466 = vmatprep.subr.mxu0 0.0
  %1467 = vmatpush2.msra.mxu0 0.0
  %1468 = vmatprep.subr.mxu0 0.0
  %1469 = vmatpush2.msra.mxu0 0.0
  %1470 = vmatprep.mubr.f32.mxu0 0.0
  %1471 = vmatmul.mubr.f32.gmra.mxu0 %v1404
  %v1472 = vpop.f32.mrf.mxu0
  %v1473 = vadd.f32 0.0, %v1472
  %v1474 = vpop.f32.mrf.mxu0
  %1475 = vdwg.mxu0
  %1477 = vrot.lane.b32.xlu0 %v1321, 8
  %v1478 = vpop.permute.xlu0 %1477
  %1481 = vrot.lane.b32.xlu0 %v1397, 16
  %v1482 = vpop.permute.xlu0 %1481
  %1485 = vrot.lane.b32.xlu0 %v1473, 24
  %v1486 = vpop.permute.xlu0 %1485
  %v1488 = vsel %vm123, %v1245, %v1478
  %v1489 = vsel %vm1156, %v1488, %v1482
  %v1490 = vsel %vm1158, %v1489, %v1486
  %1491 = vrot.lane.b32.xlu0 %v836, 8
  %v1492 = vpop.permute.xlu0 %1491
  %1494 = vrot.lane.b32.xlu0 %v837, 16
  %v1495 = vpop.permute.xlu0 %1494
  %1497 = vrot.lane.b32.xlu0 %v838, 24
  %v1498 = vpop.permute.xlu0 %1497
  %v1500 = vsel %vm123, %v835, %v1492
  %v1501 = vsel %vm1156, %v1500, %v1495
  %v1502 = vsel %vm1158, %v1501, %v1498
  %1507 = vrot.lane.b32.xlu0 %v27, 32
  %v1508 = vpop.permute.xlu0 %1507
  %1509 = vrot.lane.b32.xlu0 %v28, 32
  %v1510 = vpop.permute.xlu0 %1509
  %1511 = vrot.lane.b32.xlu0 %v29, 32
  %v1512 = vpop.permute.xlu0 %1511
  %1513 = vrot.lane.b32.xlu0 %v30, 32
  %v1514 = vpop.permute.xlu0 %1513
  %1519 = vrot.lane.b32.xlu0 %v36, 32
  %v1520 = vpop.permute.xlu0 %1519
  %v1523 = vsel %vm38, %v1159, 0
  %v1526 = vsel %vm38, %v1490, 0
  %1528 = vmatprep.subr.mxu0 0.0
  %1529 = vmatpush1.msra.mxu0 0.0
  %1530 = vmatprep.subr.mxu0 0.0
  %1531 = vmatpush1.msra.mxu0 0.0
  %1532 = vmatprep.subr.mxu0 0.0
  %1533 = vmatpush1.msra.mxu0 0.0
  %1534 = vmatprep.subr.mxu0 0.0
  %1535 = vmatpush1.msra.mxu0 0.0
  %1536 = vmatprep.subr.mxu0 0.0
  %1537 = vmatpush1.msra.mxu0 0.0
  %1538 = vmatprep.subr.mxu0 0.0
  %1539 = vmatpush1.msra.mxu0 0.0
  %1540 = vmatprep.subr.mxu0 0.0
  %1541 = vmatpush1.msra.mxu0 0.0
  %1542 = vmatprep.subr.mxu0 0.0
  %1543 = vmatpush1.msra.mxu0 0.0
  %1544 = vmatprep.subr.mxu0 0.0
  %1545 = vmatpush1.msra.mxu0 0.0
  %1546 = vmatprep.subr.mxu0 0.0
  %1547 = vmatpush1.msra.mxu0 0.0
  %1548 = vmatprep.subr.mxu0 0.0
  %1549 = vmatpush1.msra.mxu0 0.0
  %1550 = vmatprep.subr.mxu0 0.0
  %1551 = vmatpush1.msra.mxu0 0.0
  %1552 = vmatprep.subr.mxu0 0.0
  %1553 = vmatpush1.msra.mxu0 %v1514
  %1554 = vmatprep.subr.mxu0 0.0
  %1555 = vmatpush1.msra.mxu0 %v1512
  %1556 = vmatprep.subr.mxu0 0.0
  %1557 = vmatpush1.msra.mxu0 %v1510
  %1558 = vmatprep.subr.mxu0 0.0
  %1559 = vmatpush1.msra.mxu0 %v1508
  %1560 = vmatprep.subr.mxu0 0.0
  %1561 = vmatpush2.msra.mxu0 0.0
  %1562 = vmatprep.subr.mxu0 0.0
  %1563 = vmatpush2.msra.mxu0 0.0
  %1564 = vmatprep.subr.mxu0 0.0
  %1565 = vmatpush2.msra.mxu0 0.0
  %1566 = vmatprep.subr.mxu0 0.0
  %1567 = vmatpush2.msra.mxu0 0.0
  %1568 = vmatprep.subr.mxu0 0.0
  %1569 = vmatpush2.msra.mxu0 0.0
  %1570 = vmatprep.subr.mxu0 0.0
  %1571 = vmatpush2.msra.mxu0 0.0
  %1572 = vmatprep.subr.mxu0 0.0
  %1573 = vmatpush2.msra.mxu0 0.0
  %1574 = vmatprep.subr.mxu0 0.0
  %1575 = vmatpush2.msra.mxu0 0.0
  %1576 = vmatprep.subr.mxu0 0.0
  %1577 = vmatpush2.msra.mxu0 0.0
  %1578 = vmatprep.subr.mxu0 0.0
  %1579 = vmatpush2.msra.mxu0 0.0
  %1580 = vmatprep.subr.mxu0 0.0
  %1581 = vmatpush2.msra.mxu0 0.0
  %1582 = vmatprep.subr.mxu0 0.0
  %1583 = vmatpush2.msra.mxu0 0.0
  %1584 = vmatprep.subr.mxu0 0.0
  %1585 = vmatpush2.msra.mxu0 0.0
  %1586 = vmatprep.subr.mxu0 0.0
  %1587 = vmatpush2.msra.mxu0 0.0
  %1588 = vmatprep.subr.mxu0 0.0
  %1589 = vmatpush2.msra.mxu0 0.0
  %1590 = vmatprep.subr.mxu0 0.0
  %1591 = vmatpush2.msra.mxu0 0.0
  %1592 = vmatprep.mubr.f32.mxu0 0.0
  %1593 = vmatmul.mubr.f32.gmra.mxu0 %v1523
  %v1594 = vpop.f32.mrf.mxu0
  %v1595 = vadd.f32 %v1520, %v1594
  %v1596 = vpop.f32.mrf.mxu0
  %1597 = vmatprep.mubr.f32.mxu0 0.0
  %1598 = vmatmul.mubr.f32.gmra.mxu0 %v1526
  %v1599 = vpop.f32.mrf.mxu0
  %v1600 = vadd.f32 %v1520, %v1599
  %v1601 = vpop.f32.mrf.mxu0
  %1602 = vdwg.mxu0
  %v1603 = vadd.f32 %v1595, %v17
  %v1604 = vadd.f32 %v1600, %v18
  %v1605 = vsel %vm38, %v1603, 0.0
  %1606 = vadd.xlane.f32.xlu0 %v1605
  %v1607 = vpop.xlane.xlu0 %1606
  %v1608 = vsel %vm38, %v1604, 0.0
  %1609 = vadd.xlane.f32.xlu0 %v1608
  %v1610 = vpop.xlane.xlu0 %1609
  %v1611 = vrcp.pop 32.0
  %v1612 = vmul.f32 %v1607, %v1611
  %v1613 = vmul.f32 %v1610, %v1611
  %v1614 = vsub.f32 %v1603, %v1612
  %v1615 = vsub.f32 %v1604, %v1613
  %v1616 = vmul.f32 %v1614, %v1614
  %v1617 = vmul.f32 %v1615, %v1615
  %v1618 = vsel %vm38, %v1616, 0.0
  %1619 = vadd.xlane.f32.xlu0 %v1618
  %v1620 = vpop.xlane.xlu0 %1619
  %v1621 = vsel %vm38, %v1617, 0.0
  %1622 = vadd.xlane.f32.xlu0 %v1621
  %v1623 = vpop.xlane.xlu0 %1622
  %v1624 = vmul.f32 %v1620, %v1611
  %v1625 = vmul.f32 %v1623, %v1611
  %v1626 = vadd.f32 %v1624, 1e-05
  %v1627 = vadd.f32 %v1625, 1e-05
  %v1628 = vrsqrt.pop %v1626
  %v1629 = vrsqrt.pop %v1627
  %v1630 = vmul.f32 %v1614, %v1628
  %v1631 = vmul.f32 %v1615, %v1629
  %1634 = vrot.lane.b32.xlu0 %v1171, 32
  %v1635 = vpop.permute.xlu0 %1634
  %1636 = vrot.lane.b32.xlu0 %v1502, 32
  %v1637 = vpop.permute.xlu0 %1636
  %v1640 = vsel %vm38, %v1630, %v1635
  %v1641 = vsel %vm38, %v1631, %v1637
  %vm1642 = vcmask 523264
  %v1643 = vsel %vm1642, %v1640, 0.0
  %v1644 = vsel %vm1642, %v1641, 0.0
  %1645 = vst [vmem:[%s4] sm:$0xff] %v1643
  %1646 = vst [vmem:[%s4 + $0x8] sm:$0xff] %v1644
  // Predicated region
  $region18: #{multi_head_attention.1} parent=0 // pred_check
    _
  $region19: #{multi_head_attention.1} parent=0 // pred_check_branch
    %1648 = sbr.rel (0) target = $region21
  $region20: #{multi_head_attention.1} parent=0 // pred_region
    _
  $region21: #{multi_head_attention.1} parent=0 // pred_fallthru
    _
  // Predicated region
  $region22: #{multi_head_attention.1} parent=0 // pred_check
    _
  $region23: #{multi_head_attention.1} parent=0 // pred_check_branch
    %1650 = sbr.rel (0) target = $region25
  $region24: #{multi_head_attention.1} parent=0 // pred_region
    _
  $region25: #{multi_head_attention.1} parent=0 // pred_fallthru
    _

</llo_original>
